<compile_context>
chip_gen: v5e
topology: v5e:2x2
jax: 0.10.0
libtpu: 0.0.40
codegen_flags: <defaults>
</compile_context>

<pallas_src>
import jax
import jax.numpy as jnp
from jax.experimental import pallas as pl
from jax.experimental.pallas import tpu as pltpu

INFINITY_NUMBER = 1e12


# ----------------------------- helpers (wrapper) ------------------------------

def _vmem_limit_bytes():
    """Per-generation scoped-VMEM budget: ~3/4 of physical, capped at 100 MiB."""
    phys = None
    try:
        phys = getattr(pltpu.get_tpu_info(), "vmem_capacity_bytes", None)
    except Exception:
        phys = None
    if not phys:
        phys = 64 * 1024 * 1024
    return int(min(phys * 3 // 4, 100 * 1024 * 1024))


def _pick_time_block(T, B, H, vmem_limit_bytes, cap=128):
    """Largest divisor of T that is a multiple of 8, <= cap and VMEM-fitting; else T."""
    # approx per-timestep VMEM: gates_x slab (bf16, 2-buf) + out block (f32, 2-buf)
    # + hblk scratch (f32)
    per_t = B * H * (4 * 2 * 2 + 4 * 2 + 4)
    cap = min(cap, max(8, (vmem_limit_bytes // 4) // max(per_t, 1)))
    best = None
    for d in range(8, min(T, cap) + 1, 8):
        if T % d == 0:
            best = d
    return best if best is not None else T


# ------------------ fused kernel: LSTM recurrence + SoftDot -------------------

def lstm_attention_fused_kernel(gx_ref, h0_ref, c0_ref, whh_ref,
                                ctx_ref, mbias_ref, win_ref, woutc_ref, wouth_ref,
                                out_ref, hy_ref, cy_ref,
                                h_scr, c_scr, hblk_scr):
    """One grid step == Tc timesteps of LSTMCell + SoftDot attention on the block.

    gx_ref   : (Tc, Bb, 4H) bf16   precomputed x @ W_ih^T + (b_ih + b_hh), time-major
    whh_ref  : (H, 4H)      bf16   recurrent weight, pre-transposed
    ctx_ref  : (Bb, S, H)   bf16   context (resident across the time axis)
    mbias_ref: (Bb, 1, S)   f32    additive mask bias (0 or -1e12)
    out_ref  : (Bb, Tc, H)  f32    h_tilde, written batch-first (no wrapper transpose)
    h_scr/c_scr: (Bb, H)    f32    state carried across time-grid steps
    hblk_scr : (Tc, Bb, H)  f32    per-step hidden states for this block
    """
    tc = pl.program_id(1)
    H = h0_ref.shape[1]
    Tc = gx_ref.shape[0]
    f32 = jnp.float32
    bf16 = jnp.bfloat16

    @pl.when(tc == 0)
    def _():
        h_scr[...] = h0_ref[...]
        c_scr[...] = c0_ref[...]

    whh = whh_ref[...]  # hoisted out of the unrolled loop (bf16, resident)

    def _sigmoid(x):
        # 1 EUP push (tanh) instead of exp+reciprocal.
        return 0.5 * jnp.tanh(0.5 * x) + 0.5

    def step(tt, carry):
        h, c = carry
        gates = gx_ref[tt].astype(f32) + jnp.dot(
            h.astype(bf16), whh, preferred_element_type=f32)      # (Bb, 4H)
        i_g = _sigmoid(gates[:, 0:H])
        f_g = _sigmoid(gates[:, H:2 * H])
        g_g = jnp.tanh(gates[:, 2 * H:3 * H])
        o_g = _sigmoid(gates[:, 3 * H:4 * H])
        c_new = f_g * c + i_g * g_g
        h_new = o_g * jnp.tanh(c_new)
        hblk_scr[tt] = h_new
        return h_new, c_new

    h_fin, c_fin = jax.lax.fori_loop(
        0, Tc, step, (h_scr[...], c_scr[...]), unroll=True)

    h_scr[...] = h_fin
    c_scr[...] = c_fin

    # Final-state outputs only on the last time step (resident output blocks).
    @pl.when(tc == pl.num_programs(1) - 1)
    def _():
        hy_ref[...] = h_fin
        cy_ref[...] = c_fin

    # ------------- SoftDot attention for the whole (Tc, Bb, H) block -----------
    h_tbh = hblk_scr[...].astype(bf16)      # (Tc, Bb, H)
    ctx = ctx_ref[...]                       # (Bb, S, H) bf16
    mbias = mbias_ref[...]                   # (Bb, 1, S) f32

    # target = linear_in(h): contract over H   -> (Tc, Bb, H)
    target = jax.lax.dot_general(h_tbh, win_ref[...],
                                 (((2,), (0,)), ((), ())),
                                 preferred_element_type=f32)
    # scores[b, t, s] = <target[t, b], ctx[b, s]>   -> (Bb, Tc, S)
    scores = jax.lax.dot_general(target.astype(bf16), ctx,
                                 (((2,), (2,)), ((1,), (0,))),
                                 preferred_element_type=f32)
    scores = scores + mbias                              # masked_fill as additive bias
    scores = scores - jnp.max(scores, axis=2, keepdims=True)
    e = jnp.exp(scores)
    p = e * pl.reciprocal(jnp.sum(e, axis=2, keepdims=True), approx=True)
    # weighted context: (Bb, Tc, S) x (Bb, S, H) -> (Bb, Tc, H)
    wctx = jax.lax.dot_general(p.astype(bf16), ctx,
                               (((2,), (1,)), ((0,), (0,))),
                               preferred_element_type=f32)
    # linear_out(cat(wctx, h)) == wctx @ Wout[:, :H]^T + h @ Wout[:, H:]^T
    h_bth = jnp.transpose(h_tbh, (1, 0, 2))              # (Bb, Tc, H), in-VMEM transpose
    h_tilde = jnp.tanh(
        jax.lax.dot_general(wctx.astype(bf16), woutc_ref[...],
                            (((2,), (0,)), ((), ())), preferred_element_type=f32)
        + jax.lax.dot_general(h_bth, wouth_ref[...],
                              (((2,), (0,)), ((), ())), preferred_element_type=f32))
    out_ref[...] = h_tilde.astype(out_ref.dtype)


# --------------------------------- wrapper ------------------------------------

def lstm_attention_pallas(x_bti, h0, c0, ctx, ctx_mask, params,
                          *, t_block=None, b_block=None):
    """x_bti: (B, T, I) batch-first input.  Returns (output (B, T, H), (hy, cy))."""
    B, T, I = x_bti.shape
    H = h0.shape[1]
    S = ctx.shape[1]
    f32 = jnp.float32
    bf16 = jnp.bfloat16

    vmem_limit = _vmem_limit_bytes()

    # ---- hoisted input projection: one big matmul for all timesteps (XLA),
    #      emitted time-major and stored bf16 (halves the dominant HBM stream).
    bias = (params["b_ih"] + params["b_hh"]).astype(f32)                   # (4H,)
    gates_x = (jnp.einsum("bti,gi->tbg", x_bti.astype(f32),
                          params["w_ih"].astype(f32)) + bias).astype(bf16)  # (T, B, 4H)

    whh_t = params["w_hh"].T.astype(bf16)                                  # (H, 4H)
    win_t = params["w_attn_in"].T.astype(bf16)                             # (H, H)
    wout = params["w_attn_out"].astype(f32)                                # (H, 2H)
    wout_ctx_t = jnp.transpose(wout[:, :H]).astype(bf16)                   # (H, H)
    wout_h_t = jnp.transpose(wout[:, H:]).astype(bf16)                     # (H, H)

    ctx_bf = ctx.astype(bf16)                                              # (B, S, H)
    # Additive mask bias replaces per-step compare+select.
    mbias = (ctx_mask.astype(f32) * (-INFINITY_NUMBER)).reshape(B, 1, S)

    # ---- block sizes
    Tc = t_block if t_block is not None else _pick_time_block(T, B, H, vmem_limit)
    assert T % Tc == 0, "time block must divide T"
    assert Tc % 8 == 0 or Tc == T, "time block must be 8-aligned or the full sequence"
    n_tc = T // Tc

    Bb = b_block if b_block is not None else B      # v7x: pass b_block=B//2 (>=8)
    assert B % Bb == 0 and (Bb == B or Bb % 8 == 0)
    n_b = B // Bb

    out, hy, cy = pl.pallas_call(
        lstm_attention_fused_kernel,
        out_shape=(jax.ShapeDtypeStruct((B, T, H), f32),
                   jax.ShapeDtypeStruct((B, H), f32),
                   jax.ShapeDtypeStruct((B, H), f32)),
        grid_spec=pltpu.PrefetchScalarGridSpec(
            num_scalar_prefetch=0,
            grid=(n_b, n_tc),
            in_specs=[
                pl.BlockSpec((Tc, Bb, 4 * H), lambda b, tc: (tc, b, 0)),   # gates_x slab
                pl.BlockSpec((Bb, H), lambda b, tc: (b, 0)),               # h0
                pl.BlockSpec((Bb, H), lambda b, tc: (b, 0)),               # c0
                pl.BlockSpec((H, 4 * H), lambda b, tc: (0, 0)),            # W_hh^T (resident)
                pl.BlockSpec((Bb, S, H), lambda b, tc: (b, 0, 0)),         # ctx (resident)
                pl.BlockSpec((Bb, 1, S), lambda b, tc: (b, 0, 0)),         # mask bias
                pl.BlockSpec((H, H), lambda b, tc: (0, 0)),                # linear_in^T
                pl.BlockSpec((H, H), lambda b, tc: (0, 0)),                # linear_out ctx-half^T
                pl.BlockSpec((H, H), lambda b, tc: (0, 0)),                # linear_out h-half^T
            ],
            out_specs=[
                pl.BlockSpec((Bb, Tc, H), lambda b, tc: (b, tc, 0)),       # h_tilde (batch-first)
                pl.BlockSpec((Bb, H), lambda b, tc: (b, 0)),               # final hy
                pl.BlockSpec((Bb, H), lambda b, tc: (b, 0)),               # final cy
            ],
            scratch_shapes=[pltpu.VMEM((Bb, H), f32),
                            pltpu.VMEM((Bb, H), f32),
                            pltpu.VMEM((Tc, Bb, H), f32)],
        ),
        compiler_params=pltpu.CompilerParams(
            dimension_semantics=("parallel", "arbitrary"),
            vmem_limit_bytes=vmem_limit),
    )(gates_x, h0.astype(f32), c0.astype(f32), whh_t,
      ctx_bf, mbias, win_t, wout_ctx_t, wout_h_t)

    return out, (hy, cy)


# ------------------------------ pure-JAX reference ----------------------------

def lstm_attention_ref(x_bti, h0, c0, ctx, ctx_mask, params):
    """Pure-JAX f32 reference mirroring the PyTorch forward (attn_type='soft')."""
    H = h0.shape[1]
    wih, whh = params["w_ih"], params["w_hh"]
    b = params["b_ih"] + params["b_hh"]
    win, wout = params["w_attn_in"], params["w_attn_out"]

    def step(carry, x_t):
        h, c = carry
        gates = x_t @ wih.T + h @ whh.T + b
        i_g = jax.nn.sigmoid(gates[:, 0:H])
        f_g = jax.nn.sigmoid(gates[:, H:2 * H])
        g_g = jnp.tanh(gates[:, 2 * H:3 * H])
        o_g = jax.nn.sigmoid(gates[:, 3 * H:4 * H])
        c_new = f_g * c + i_g * g_g
        h_new = o_g * jnp.tanh(c_new)
        target = h_new @ win.T
        attn = jnp.einsum("bsh,bh->bs", ctx, target)
        attn = jnp.where(ctx_mask > 0, -INFINITY_NUMBER, attn)
        attn = jax.nn.softmax(attn, axis=1)
        wctx = jnp.einsum("bs,bsh->bh", attn, ctx)
        h_tilde = jnp.tanh(jnp.concatenate([wctx, h_new], axis=1) @ wout.T)
        return (h_new, c_new), h_tilde

    (hy, cy), out_tbh = jax.lax.scan(step, (h0, c0),
                                     jnp.transpose(x_bti, (1, 0, 2)))
    return jnp.transpose(out_tbh, (1, 0, 2)), (hy, cy)


if __name__ == "__main__":
    B, T, I, H, S = 2, 16, 16, 32, 8

    key = jax.random.PRNGKey(0)
    ks = jax.random.split(key, 12)
    params = {
        "w_ih": 0.1 * jax.random.normal(ks[0], (4 * H, I), jnp.float32),
        "w_hh": 0.1 * jax.random.normal(ks[1], (4 * H, H), jnp.float32),
        "b_ih": 0.1 * jax.random.normal(ks[2], (4 * H,), jnp.float32),
        "b_hh": 0.1 * jax.random.normal(ks[3], (4 * H,), jnp.float32),
        "w_attn_in": 0.1 * jax.random.normal(ks[4], (H, H), jnp.float32),
        "w_attn_out": 0.1 * jax.random.normal(ks[5], (H, 2 * H), jnp.float32),
    }

    x = jax.random.normal(ks[6], (B, T, I), jnp.float32)
    h0 = jax.random.normal(ks[7], (B, H), jnp.float32)
    c0 = jax.random.normal(ks[8], (B, H), jnp.float32)
    ctx = jax.random.normal(ks[9], (B, S, H), jnp.float32)
    # mask last two source positions of batch element 1 (1.0 = masked)
    ctx_mask = jnp.zeros((B, S), jnp.float32).at[1, -2:].set(1.0)

    # t_block=8 (< T=16) exercises the cross-grid-step h/c scratch carry (2 blocks)
    # while keeping the 8-aligned (sublane-dense) output block.
    out, (hy, cy) = lstm_attention_pallas(x, h0, c0, ctx, ctx_mask, params, t_block=8)
    out = jax.block_until_ready(out)
    hy = jax.block_until_ready(hy)
    cy = jax.block_until_ready(cy)

    out_r, (hy_r, cy_r) = lstm_attention_ref(x, h0, c0, ctx, ctx_mask, params)

    # Tolerances relaxed for bf16 MXU operands / bf16 gates_x storage and the
    # EUP approx-reciprocal softmax denominator (reference is pure f32).
    assert jnp.allclose(hy, hy_r, atol=3e-2, rtol=3e-2), "hy mismatch"
    assert jnp.allclose(cy, cy_r, atol=3e-2, rtol=3e-2), "cy mismatch"
    assert jnp.allclose(out, out_r, atol=3e-2, rtol=3e-2), "output mismatch"

    print("KERNEL_OK")
</pallas_src>

<mosaic_0001>
module attributes {stable_mosaic.version = 11 : i64} {
  func.func @lstm_attention_fused_kernel(%arg0: i32, %arg1: i32, %arg2: memref<8x2x128xbf16, #tpu.memory_space<vmem>>, %arg3: memref<2x32xf32, #tpu.memory_space<vmem>>, %arg4: memref<2x32xf32, #tpu.memory_space<vmem>>, %arg5: memref<32x128xbf16, #tpu.memory_space<vmem>>, %arg6: memref<2x8x32xbf16, #tpu.memory_space<vmem>>, %arg7: memref<2x1x8xf32, #tpu.memory_space<vmem>>, %arg8: memref<32x32xbf16, #tpu.memory_space<vmem>>, %arg9: memref<32x32xbf16, #tpu.memory_space<vmem>>, %arg10: memref<32x32xbf16, #tpu.memory_space<vmem>>, %arg11: memref<2x8x32xf32, #tpu.memory_space<vmem>>, %arg12: memref<2x32xf32, #tpu.memory_space<vmem>>, %arg13: memref<2x32xf32, #tpu.memory_space<vmem>>, %arg14: memref<2x32xf32, #tpu.memory_space<vmem>>, %arg15: memref<2x32xf32, #tpu.memory_space<vmem>>, %arg16: memref<8x2x32xf32, #tpu.memory_space<vmem>>) attributes {dimension_semantics = [#tpu.dimension_semantics<parallel>, #tpu.dimension_semantics<arbitrary>], iteration_bounds = array<i64: 1, 2>, scalar_prefetch = 0 : i64, scratch_operands = 3 : i64, tpu.core_type = #tpu.core_type<tc>, window_params = [{transform_indices = @transform_0, window_bounds = array<i64: 8, 2, 128>}, {transform_indices = @transform_1, window_bounds = array<i64: 2, 32>}, {transform_indices = @transform_2, window_bounds = array<i64: 2, 32>}, {pipeline_mode = #tpu.pipeline_mode<synchronous>, transform_indices = @transform_3, window_bounds = array<i64: 32, 128>}, {transform_indices = @transform_4, window_bounds = array<i64: 2, 8, 32>}, {transform_indices = @transform_5, window_bounds = array<i64: 2, 1, 8>}, {pipeline_mode = #tpu.pipeline_mode<synchronous>, transform_indices = @transform_6, window_bounds = array<i64: 32, 32>}, {pipeline_mode = #tpu.pipeline_mode<synchronous>, transform_indices = @transform_7, window_bounds = array<i64: 32, 32>}, {pipeline_mode = #tpu.pipeline_mode<synchronous>, transform_indices = @transform_8, window_bounds = array<i64: 32, 32>}, {transform_indices = @transform_9, window_bounds = array<i64: 2, 8, 32>}, {transform_indices = @transform_10, window_bounds = array<i64: 2, 32>}, {transform_indices = @transform_11, window_bounds = array<i64: 2, 32>}]} {
    %c0_i32 = arith.constant 0 : i32
    %0 = arith.cmpi eq, %arg1, %c0_i32 : i32
    %1 = arith.extui %0 : i1 to i32
    %c0_i32_0 = arith.constant 0 : i32
    %2 = arith.cmpi ne, %1, %c0_i32_0 : i32
    scf.if %2 {
      %c0_149 = arith.constant 0 : index
      %c0_150 = arith.constant 0 : index
      %378 = vector.load %arg3[%c0_149, %c0_150] : memref<2x32xf32, #tpu.memory_space<vmem>>, vector<2x32xf32>
      %c0_151 = arith.constant 0 : index
      %c0_152 = arith.constant 0 : index
      %379 = vector.load %arg14[%c0_151, %c0_152] : memref<2x32xf32, #tpu.memory_space<vmem>>, vector<2x32xf32>
      tpu.vector_store %arg14[%c0_151, %c0_152], %378 {strides = array<i32>} : memref<2x32xf32, #tpu.memory_space<vmem>>, vector<2x32xf32>,
      %c0_153 = arith.constant 0 : index
      %c0_154 = arith.constant 0 : index
      %380 = vector.load %arg4[%c0_153, %c0_154] : memref<2x32xf32, #tpu.memory_space<vmem>>, vector<2x32xf32>
      %c0_155 = arith.constant 0 : index
      %c0_156 = arith.constant 0 : index
      %381 = vector.load %arg15[%c0_155, %c0_156] : memref<2x32xf32, #tpu.memory_space<vmem>>, vector<2x32xf32>
      tpu.vector_store %arg15[%c0_155, %c0_156], %380 {strides = array<i32>} : memref<2x32xf32, #tpu.memory_space<vmem>>, vector<2x32xf32>,
    } else {
    }
    %c0 = arith.constant 0 : index
    %c0_1 = arith.constant 0 : index
    %3 = vector.load %arg5[%c0, %c0_1] : memref<32x128xbf16, #tpu.memory_space<vmem>>, vector<32x128xbf16>
    %c0_2 = arith.constant 0 : index
    %c0_3 = arith.constant 0 : index
    %4 = vector.load %arg14[%c0_2, %c0_3] : memref<2x32xf32, #tpu.memory_space<vmem>>, vector<2x32xf32>
    %c0_4 = arith.constant 0 : index
    %c0_5 = arith.constant 0 : index
    %5 = vector.load %arg15[%c0_4, %c0_5] : memref<2x32xf32, #tpu.memory_space<vmem>>, vector<2x32xf32>
    %c0_i32_6 = arith.constant 0 : i32
    %6 = arith.index_cast %c0_i32_6 : i32 to index
    %c0_7 = arith.constant 0 : index
    %c0_8 = arith.constant 0 : index
    %7 = vector.load %arg2[%6, %c0_7, %c0_8] : memref<8x2x128xbf16, #tpu.memory_space<vmem>>, vector<1x2x128xbf16>
    %8 = vector.shape_cast %7 : vector<1x2x128xbf16> to vector<2x128xbf16>
    %9 = arith.extf %8 : vector<2x128xbf16> to vector<2x128xf32>
    %10 = arith.truncf %4 : vector<2x32xf32> to vector<2x32xbf16>
    %cst = arith.constant dense<0.000000e+00> : vector<2x128xf32>
    %11 = tpu.matmul %10, %3, %cst {dimension_numbers = #tpu.dot_dimension_numbers<[1], [0], [0], [1], [0, 0, 1, 1], [], []>} : vector<2x32xbf16>, vector<32x128xbf16>, vector<2x128xf32> -> vector<2x128xf32>
    %12 = arith.addf %9, %11 : vector<2x128xf32>
    %13 = vector.extract_strided_slice %12 {offsets = [0, 0], sizes = [2, 32], strides = [1, 1]} : vector<2x128xf32> to vector<2x32xf32>
    %cst_9 = arith.constant 5.000000e-01 : f32
    %14 = vector.broadcast %cst_9 : f32 to vector<2x32xf32>
    %15 = arith.mulf %14, %13 : vector<2x32xf32>
    %16 = math.tanh %15 : vector<2x32xf32>
    %cst_10 = arith.constant 5.000000e-01 : f32
    %17 = vector.broadcast %cst_10 : f32 to vector<2x32xf32>
    %18 = arith.mulf %17, %16 : vector<2x32xf32>
    %cst_11 = arith.constant 5.000000e-01 : f32
    %19 = vector.broadcast %cst_11 : f32 to vector<2x32xf32>
    %20 = arith.addf %18, %19 : vector<2x32xf32>
    %21 = vector.extract_strided_slice %12 {offsets = [0, 32], sizes = [2, 32], strides = [1, 1]} : vector<2x128xf32> to vector<2x32xf32>
    %cst_12 = arith.constant 5.000000e-01 : f32
    %22 = vector.broadcast %cst_12 : f32 to vector<2x32xf32>
    %23 = arith.mulf %22, %21 : vector<2x32xf32>
    %24 = math.tanh %23 : vector<2x32xf32>
    %cst_13 = arith.constant 5.000000e-01 : f32
    %25 = vector.broadcast %cst_13 : f32 to vector<2x32xf32>
    %26 = arith.mulf %25, %24 : vector<2x32xf32>
    %cst_14 = arith.constant 5.000000e-01 : f32
    %27 = vector.broadcast %cst_14 : f32 to vector<2x32xf32>
    %28 = arith.addf %26, %27 : vector<2x32xf32>
    %29 = vector.extract_strided_slice %12 {offsets = [0, 64], sizes = [2, 32], strides = [1, 1]} : vector<2x128xf32> to vector<2x32xf32>
    %30 = math.tanh %29 : vector<2x32xf32>
    %31 = vector.extract_strided_slice %12 {offsets = [0, 96], sizes = [2, 32], strides = [1, 1]} : vector<2x128xf32> to vector<2x32xf32>
    %cst_15 = arith.constant 5.000000e-01 : f32
    %32 = vector.broadcast %cst_15 : f32 to vector<2x32xf32>
    %33 = arith.mulf %32, %31 : vector<2x32xf32>
    %34 = math.tanh %33 : vector<2x32xf32>
    %cst_16 = arith.constant 5.000000e-01 : f32
    %35 = vector.broadcast %cst_16 : f32 to vector<2x32xf32>
    %36 = arith.mulf %35, %34 : vector<2x32xf32>
    %cst_17 = arith.constant 5.000000e-01 : f32
    %37 = vector.broadcast %cst_17 : f32 to vector<2x32xf32>
    %38 = arith.addf %36, %37 : vector<2x32xf32>
    %39 = arith.mulf %28, %5 : vector<2x32xf32>
    %40 = arith.mulf %20, %30 : vector<2x32xf32>
    %41 = arith.addf %39, %40 : vector<2x32xf32>
    %42 = math.tanh %41 : vector<2x32xf32>
    %43 = arith.mulf %38, %42 : vector<2x32xf32>
    %44 = arith.index_cast %c0_i32_6 : i32 to index
    %c0_18 = arith.constant 0 : index
    %c0_19 = arith.constant 0 : index
    %45 = vector.load %arg16[%44, %c0_18, %c0_19] : memref<8x2x32xf32, #tpu.memory_space<vmem>>, vector<1x2x32xf32>
    %46 = vector.shape_cast %45 : vector<1x2x32xf32> to vector<2x32xf32>
    %47 = vector.shape_cast %43 : vector<2x32xf32> to vector<1x2x32xf32>
    tpu.vector_store %arg16[%44, %c0_18, %c0_19], %47 {strides = array<i32>} : memref<8x2x32xf32, #tpu.memory_space<vmem>>, vector<1x2x32xf32>,
    %c1_i32 = arith.constant 1 : i32
    %48 = arith.index_cast %c1_i32 : i32 to index
    %c0_20 = arith.constant 0 : index
    %c0_21 = arith.constant 0 : index
    %49 = vector.load %arg2[%48, %c0_20, %c0_21] : memref<8x2x128xbf16, #tpu.memory_space<vmem>>, vector<1x2x128xbf16>
    %50 = vector.shape_cast %49 : vector<1x2x128xbf16> to vector<2x128xbf16>
    %51 = arith.extf %50 : vector<2x128xbf16> to vector<2x128xf32>
    %52 = arith.truncf %43 : vector<2x32xf32> to vector<2x32xbf16>
    %cst_22 = arith.constant dense<0.000000e+00> : vector<2x128xf32>
    %53 = tpu.matmul %52, %3, %cst_22 {dimension_numbers = #tpu.dot_dimension_numbers<[1], [0], [0], [1], [0, 0, 1, 1], [], []>} : vector<2x32xbf16>, vector<32x128xbf16>, vector<2x128xf32> -> vector<2x128xf32>
    %54 = arith.addf %51, %53 : vector<2x128xf32>
    %55 = vector.extract_strided_slice %54 {offsets = [0, 0], sizes = [2, 32], strides = [1, 1]} : vector<2x128xf32> to vector<2x32xf32>
    %cst_23 = arith.constant 5.000000e-01 : f32
    %56 = vector.broadcast %cst_23 : f32 to vector<2x32xf32>
    %57 = arith.mulf %56, %55 : vector<2x32xf32>
    %58 = math.tanh %57 : vector<2x32xf32>
    %cst_24 = arith.constant 5.000000e-01 : f32
    %59 = vector.broadcast %cst_24 : f32 to vector<2x32xf32>
    %60 = arith.mulf %59, %58 : vector<2x32xf32>
    %cst_25 = arith.constant 5.000000e-01 : f32
    %61 = vector.broadcast %cst_25 : f32 to vector<2x32xf32>
    %62 = arith.addf %60, %61 : vector<2x32xf32>
    %63 = vector.extract_strided_slice %54 {offsets = [0, 32], sizes = [2, 32], strides = [1, 1]} : vector<2x128xf32> to vector<2x32xf32>
    %cst_26 = arith.constant 5.000000e-01 : f32
    %64 = vector.broadcast %cst_26 : f32 to vector<2x32xf32>
    %65 = arith.mulf %64, %63 : vector<2x32xf32>
    %66 = math.tanh %65 : vector<2x32xf32>
    %cst_27 = arith.constant 5.000000e-01 : f32
    %67 = vector.broadcast %cst_27 : f32 to vector<2x32xf32>
    %68 = arith.mulf %67, %66 : vector<2x32xf32>
    %cst_28 = arith.constant 5.000000e-01 : f32
    %69 = vector.broadcast %cst_28 : f32 to vector<2x32xf32>
    %70 = arith.addf %68, %69 : vector<2x32xf32>
    %71 = vector.extract_strided_slice %54 {offsets = [0, 64], sizes = [2, 32], strides = [1, 1]} : vector<2x128xf32> to vector<2x32xf32>
    %72 = math.tanh %71 : vector<2x32xf32>
    %73 = vector.extract_strided_slice %54 {offsets = [0, 96], sizes = [2, 32], strides = [1, 1]} : vector<2x128xf32> to vector<2x32xf32>
    %cst_29 = arith.constant 5.000000e-01 : f32
    %74 = vector.broadcast %cst_29 : f32 to vector<2x32xf32>
    %75 = arith.mulf %74, %73 : vector<2x32xf32>
    %76 = math.tanh %75 : vector<2x32xf32>
    %cst_30 = arith.constant 5.000000e-01 : f32
    %77 = vector.broadcast %cst_30 : f32 to vector<2x32xf32>
    %78 = arith.mulf %77, %76 : vector<2x32xf32>
    %cst_31 = arith.constant 5.000000e-01 : f32
    %79 = vector.broadcast %cst_31 : f32 to vector<2x32xf32>
    %80 = arith.addf %78, %79 : vector<2x32xf32>
    %81 = arith.mulf %70, %41 : vector<2x32xf32>
    %82 = arith.mulf %62, %72 : vector<2x32xf32>
    %83 = arith.addf %81, %82 : vector<2x32xf32>
    %84 = math.tanh %83 : vector<2x32xf32>
    %85 = arith.mulf %80, %84 : vector<2x32xf32>
    %86 = arith.index_cast %c1_i32 : i32 to index
    %c0_32 = arith.constant 0 : index
    %c0_33 = arith.constant 0 : index
    %87 = vector.load %arg16[%86, %c0_32, %c0_33] : memref<8x2x32xf32, #tpu.memory_space<vmem>>, vector<1x2x32xf32>
    %88 = vector.shape_cast %87 : vector<1x2x32xf32> to vector<2x32xf32>
    %89 = vector.shape_cast %85 : vector<2x32xf32> to vector<1x2x32xf32>
    tpu.vector_store %arg16[%86, %c0_32, %c0_33], %89 {strides = array<i32>} : memref<8x2x32xf32, #tpu.memory_space<vmem>>, vector<1x2x32xf32>,
    %c2_i32 = arith.constant 2 : i32
    %90 = arith.index_cast %c2_i32 : i32 to index
    %c0_34 = arith.constant 0 : index
    %c0_35 = arith.constant 0 : index
    %91 = vector.load %arg2[%90, %c0_34, %c0_35] : memref<8x2x128xbf16, #tpu.memory_space<vmem>>, vector<1x2x128xbf16>
    %92 = vector.shape_cast %91 : vector<1x2x128xbf16> to vector<2x128xbf16>
    %93 = arith.extf %92 : vector<2x128xbf16> to vector<2x128xf32>
    %94 = arith.truncf %85 : vector<2x32xf32> to vector<2x32xbf16>
    %cst_36 = arith.constant dense<0.000000e+00> : vector<2x128xf32>
    %95 = tpu.matmul %94, %3, %cst_36 {dimension_numbers = #tpu.dot_dimension_numbers<[1], [0], [0], [1], [0, 0, 1, 1], [], []>} : vector<2x32xbf16>, vector<32x128xbf16>, vector<2x128xf32> -> vector<2x128xf32>
    %96 = arith.addf %93, %95 : vector<2x128xf32>
    %97 = vector.extract_strided_slice %96 {offsets = [0, 0], sizes = [2, 32], strides = [1, 1]} : vector<2x128xf32> to vector<2x32xf32>
    %cst_37 = arith.constant 5.000000e-01 : f32
    %98 = vector.broadcast %cst_37 : f32 to vector<2x32xf32>
    %99 = arith.mulf %98, %97 : vector<2x32xf32>
    %100 = math.tanh %99 : vector<2x32xf32>
    %cst_38 = arith.constant 5.000000e-01 : f32
    %101 = vector.broadcast %cst_38 : f32 to vector<2x32xf32>
    %102 = arith.mulf %101, %100 : vector<2x32xf32>
    %cst_39 = arith.constant 5.000000e-01 : f32
    %103 = vector.broadcast %cst_39 : f32 to vector<2x32xf32>
    %104 = arith.addf %102, %103 : vector<2x32xf32>
    %105 = vector.extract_strided_slice %96 {offsets = [0, 32], sizes = [2, 32], strides = [1, 1]} : vector<2x128xf32> to vector<2x32xf32>
    %cst_40 = arith.constant 5.000000e-01 : f32
    %106 = vector.broadcast %cst_40 : f32 to vector<2x32xf32>
    %107 = arith.mulf %106, %105 : vector<2x32xf32>
    %108 = math.tanh %107 : vector<2x32xf32>
    %cst_41 = arith.constant 5.000000e-01 : f32
    %109 = vector.broadcast %cst_41 : f32 to vector<2x32xf32>
    %110 = arith.mulf %109, %108 : vector<2x32xf32>
    %cst_42 = arith.constant 5.000000e-01 : f32
    %111 = vector.broadcast %cst_42 : f32 to vector<2x32xf32>
    %112 = arith.addf %110, %111 : vector<2x32xf32>
    %113 = vector.extract_strided_slice %96 {offsets = [0, 64], sizes = [2, 32], strides = [1, 1]} : vector<2x128xf32> to vector<2x32xf32>
    %114 = math.tanh %113 : vector<2x32xf32>
    %115 = vector.extract_strided_slice %96 {offsets = [0, 96], sizes = [2, 32], strides = [1, 1]} : vector<2x128xf32> to vector<2x32xf32>
    %cst_43 = arith.constant 5.000000e-01 : f32
    %116 = vector.broadcast %cst_43 : f32 to vector<2x32xf32>
    %117 = arith.mulf %116, %115 : vector<2x32xf32>
    %118 = math.tanh %117 : vector<2x32xf32>
    %cst_44 = arith.constant 5.000000e-01 : f32
    %119 = vector.broadcast %cst_44 : f32 to vector<2x32xf32>
    %120 = arith.mulf %119, %118 : vector<2x32xf32>
    %cst_45 = arith.constant 5.000000e-01 : f32
    %121 = vector.broadcast %cst_45 : f32 to vector<2x32xf32>
    %122 = arith.addf %120, %121 : vector<2x32xf32>
    %123 = arith.mulf %112, %83 : vector<2x32xf32>
    %124 = arith.mulf %104, %114 : vector<2x32xf32>
    %125 = arith.addf %123, %124 : vector<2x32xf32>
    %126 = math.tanh %125 : vector<2x32xf32>
    %127 = arith.mulf %122, %126 : vector<2x32xf32>
    %128 = arith.index_cast %c2_i32 : i32 to index
    %c0_46 = arith.constant 0 : index
    %c0_47 = arith.constant 0 : index
    %129 = vector.load %arg16[%128, %c0_46, %c0_47] : memref<8x2x32xf32, #tpu.memory_space<vmem>>, vector<1x2x32xf32>
    %130 = vector.shape_cast %129 : vector<1x2x32xf32> to vector<2x32xf32>
    %131 = vector.shape_cast %127 : vector<2x32xf32> to vector<1x2x32xf32>
    tpu.vector_store %arg16[%128, %c0_46, %c0_47], %131 {strides = array<i32>} : memref<8x2x32xf32, #tpu.memory_space<vmem>>, vector<1x2x32xf32>,
    %c3_i32 = arith.constant 3 : i32
    %132 = arith.index_cast %c3_i32 : i32 to index
    %c0_48 = arith.constant 0 : index
    %c0_49 = arith.constant 0 : index
    %133 = vector.load %arg2[%132, %c0_48, %c0_49] : memref<8x2x128xbf16, #tpu.memory_space<vmem>>, vector<1x2x128xbf16>
    %134 = vector.shape_cast %133 : vector<1x2x128xbf16> to vector<2x128xbf16>
    %135 = arith.extf %134 : vector<2x128xbf16> to vector<2x128xf32>
    %136 = arith.truncf %127 : vector<2x32xf32> to vector<2x32xbf16>
    %cst_50 = arith.constant dense<0.000000e+00> : vector<2x128xf32>
    %137 = tpu.matmul %136, %3, %cst_50 {dimension_numbers = #tpu.dot_dimension_numbers<[1], [0], [0], [1], [0, 0, 1, 1], [], []>} : vector<2x32xbf16>, vector<32x128xbf16>, vector<2x128xf32> -> vector<2x128xf32>
    %138 = arith.addf %135, %137 : vector<2x128xf32>
    %139 = vector.extract_strided_slice %138 {offsets = [0, 0], sizes = [2, 32], strides = [1, 1]} : vector<2x128xf32> to vector<2x32xf32>
    %cst_51 = arith.constant 5.000000e-01 : f32
    %140 = vector.broadcast %cst_51 : f32 to vector<2x32xf32>
    %141 = arith.mulf %140, %139 : vector<2x32xf32>
    %142 = math.tanh %141 : vector<2x32xf32>
    %cst_52 = arith.constant 5.000000e-01 : f32
    %143 = vector.broadcast %cst_52 : f32 to vector<2x32xf32>
    %144 = arith.mulf %143, %142 : vector<2x32xf32>
    %cst_53 = arith.constant 5.000000e-01 : f32
    %145 = vector.broadcast %cst_53 : f32 to vector<2x32xf32>
    %146 = arith.addf %144, %145 : vector<2x32xf32>
    %147 = vector.extract_strided_slice %138 {offsets = [0, 32], sizes = [2, 32], strides = [1, 1]} : vector<2x128xf32> to vector<2x32xf32>
    %cst_54 = arith.constant 5.000000e-01 : f32
    %148 = vector.broadcast %cst_54 : f32 to vector<2x32xf32>
    %149 = arith.mulf %148, %147 : vector<2x32xf32>
    %150 = math.tanh %149 : vector<2x32xf32>
    %cst_55 = arith.constant 5.000000e-01 : f32
    %151 = vector.broadcast %cst_55 : f32 to vector<2x32xf32>
    %152 = arith.mulf %151, %150 : vector<2x32xf32>
    %cst_56 = arith.constant 5.000000e-01 : f32
    %153 = vector.broadcast %cst_56 : f32 to vector<2x32xf32>
    %154 = arith.addf %152, %153 : vector<2x32xf32>
    %155 = vector.extract_strided_slice %138 {offsets = [0, 64], sizes = [2, 32], strides = [1, 1]} : vector<2x128xf32> to vector<2x32xf32>
    %156 = math.tanh %155 : vector<2x32xf32>
    %157 = vector.extract_strided_slice %138 {offsets = [0, 96], sizes = [2, 32], strides = [1, 1]} : vector<2x128xf32> to vector<2x32xf32>
    %cst_57 = arith.constant 5.000000e-01 : f32
    %158 = vector.broadcast %cst_57 : f32 to vector<2x32xf32>
    %159 = arith.mulf %158, %157 : vector<2x32xf32>
    %160 = math.tanh %159 : vector<2x32xf32>
    %cst_58 = arith.constant 5.000000e-01 : f32
    %161 = vector.broadcast %cst_58 : f32 to vector<2x32xf32>
    %162 = arith.mulf %161, %160 : vector<2x32xf32>
    %cst_59 = arith.constant 5.000000e-01 : f32
    %163 = vector.broadcast %cst_59 : f32 to vector<2x32xf32>
    %164 = arith.addf %162, %163 : vector<2x32xf32>
    %165 = arith.mulf %154, %125 : vector<2x32xf32>
    %166 = arith.mulf %146, %156 : vector<2x32xf32>
    %167 = arith.addf %165, %166 : vector<2x32xf32>
    %168 = math.tanh %167 : vector<2x32xf32>
    %169 = arith.mulf %164, %168 : vector<2x32xf32>
    %170 = arith.index_cast %c3_i32 : i32 to index
    %c0_60 = arith.constant 0 : index
    %c0_61 = arith.constant 0 : index
    %171 = vector.load %arg16[%170, %c0_60, %c0_61] : memref<8x2x32xf32, #tpu.memory_space<vmem>>, vector<1x2x32xf32>
    %172 = vector.shape_cast %171 : vector<1x2x32xf32> to vector<2x32xf32>
    %173 = vector.shape_cast %169 : vector<2x32xf32> to vector<1x2x32xf32>
    tpu.vector_store %arg16[%170, %c0_60, %c0_61], %173 {strides = array<i32>} : memref<8x2x32xf32, #tpu.memory_space<vmem>>, vector<1x2x32xf32>,
    %c4_i32 = arith.constant 4 : i32
    %174 = arith.index_cast %c4_i32 : i32 to index
    %c0_62 = arith.constant 0 : index
    %c0_63 = arith.constant 0 : index
    %175 = vector.load %arg2[%174, %c0_62, %c0_63] : memref<8x2x128xbf16, #tpu.memory_space<vmem>>, vector<1x2x128xbf16>
    %176 = vector.shape_cast %175 : vector<1x2x128xbf16> to vector<2x128xbf16>
    %177 = arith.extf %176 : vector<2x128xbf16> to vector<2x128xf32>
    %178 = arith.truncf %169 : vector<2x32xf32> to vector<2x32xbf16>
    %cst_64 = arith.constant dense<0.000000e+00> : vector<2x128xf32>
    %179 = tpu.matmul %178, %3, %cst_64 {dimension_numbers = #tpu.dot_dimension_numbers<[1], [0], [0], [1], [0, 0, 1, 1], [], []>} : vector<2x32xbf16>, vector<32x128xbf16>, vector<2x128xf32> -> vector<2x128xf32>
    %180 = arith.addf %177, %179 : vector<2x128xf32>
    %181 = vector.extract_strided_slice %180 {offsets = [0, 0], sizes = [2, 32], strides = [1, 1]} : vector<2x128xf32> to vector<2x32xf32>
    %cst_65 = arith.constant 5.000000e-01 : f32
    %182 = vector.broadcast %cst_65 : f32 to vector<2x32xf32>
    %183 = arith.mulf %182, %181 : vector<2x32xf32>
    %184 = math.tanh %183 : vector<2x32xf32>
    %cst_66 = arith.constant 5.000000e-01 : f32
    %185 = vector.broadcast %cst_66 : f32 to vector<2x32xf32>
    %186 = arith.mulf %185, %184 : vector<2x32xf32>
    %cst_67 = arith.constant 5.000000e-01 : f32
    %187 = vector.broadcast %cst_67 : f32 to vector<2x32xf32>
    %188 = arith.addf %186, %187 : vector<2x32xf32>
    %189 = vector.extract_strided_slice %180 {offsets = [0, 32], sizes = [2, 32], strides = [1, 1]} : vector<2x128xf32> to vector<2x32xf32>
    %cst_68 = arith.constant 5.000000e-01 : f32
    %190 = vector.broadcast %cst_68 : f32 to vector<2x32xf32>
    %191 = arith.mulf %190, %189 : vector<2x32xf32>
    %192 = math.tanh %191 : vector<2x32xf32>
    %cst_69 = arith.constant 5.000000e-01 : f32
    %193 = vector.broadcast %cst_69 : f32 to vector<2x32xf32>
    %194 = arith.mulf %193, %192 : vector<2x32xf32>
    %cst_70 = arith.constant 5.000000e-01 : f32
    %195 = vector.broadcast %cst_70 : f32 to vector<2x32xf32>
    %196 = arith.addf %194, %195 : vector<2x32xf32>
    %197 = vector.extract_strided_slice %180 {offsets = [0, 64], sizes = [2, 32], strides = [1, 1]} : vector<2x128xf32> to vector<2x32xf32>
    %198 = math.tanh %197 : vector<2x32xf32>
    %199 = vector.extract_strided_slice %180 {offsets = [0, 96], sizes = [2, 32], strides = [1, 1]} : vector<2x128xf32> to vector<2x32xf32>
    %cst_71 = arith.constant 5.000000e-01 : f32
    %200 = vector.broadcast %cst_71 : f32 to vector<2x32xf32>
    %201 = arith.mulf %200, %199 : vector<2x32xf32>
    %202 = math.tanh %201 : vector<2x32xf32>
    %cst_72 = arith.constant 5.000000e-01 : f32
    %203 = vector.broadcast %cst_72 : f32 to vector<2x32xf32>
    %204 = arith.mulf %203, %202 : vector<2x32xf32>
    %cst_73 = arith.constant 5.000000e-01 : f32
    %205 = vector.broadcast %cst_73 : f32 to vector<2x32xf32>
    %206 = arith.addf %204, %205 : vector<2x32xf32>
    %207 = arith.mulf %196, %167 : vector<2x32xf32>
    %208 = arith.mulf %188, %198 : vector<2x32xf32>
    %209 = arith.addf %207, %208 : vector<2x32xf32>
    %210 = math.tanh %209 : vector<2x32xf32>
    %211 = arith.mulf %206, %210 : vector<2x32xf32>
    %212 = arith.index_cast %c4_i32 : i32 to index
    %c0_74 = arith.constant 0 : index
    %c0_75 = arith.constant 0 : index
    %213 = vector.load %arg16[%212, %c0_74, %c0_75] : memref<8x2x32xf32, #tpu.memory_space<vmem>>, vector<1x2x32xf32>
    %214 = vector.shape_cast %213 : vector<1x2x32xf32> to vector<2x32xf32>
    %215 = vector.shape_cast %211 : vector<2x32xf32> to vector<1x2x32xf32>
    tpu.vector_store %arg16[%212, %c0_74, %c0_75], %215 {strides = array<i32>} : memref<8x2x32xf32, #tpu.memory_space<vmem>>, vector<1x2x32xf32>,
    %c5_i32 = arith.constant 5 : i32
    %216 = arith.index_cast %c5_i32 : i32 to index
    %c0_76 = arith.constant 0 : index
    %c0_77 = arith.constant 0 : index
    %217 = vector.load %arg2[%216, %c0_76, %c0_77] : memref<8x2x128xbf16, #tpu.memory_space<vmem>>, vector<1x2x128xbf16>
    %218 = vector.shape_cast %217 : vector<1x2x128xbf16> to vector<2x128xbf16>
    %219 = arith.extf %218 : vector<2x128xbf16> to vector<2x128xf32>
    %220 = arith.truncf %211 : vector<2x32xf32> to vector<2x32xbf16>
    %cst_78 = arith.constant dense<0.000000e+00> : vector<2x128xf32>
    %221 = tpu.matmul %220, %3, %cst_78 {dimension_numbers = #tpu.dot_dimension_numbers<[1], [0], [0], [1], [0, 0, 1, 1], [], []>} : vector<2x32xbf16>, vector<32x128xbf16>, vector<2x128xf32> -> vector<2x128xf32>
    %222 = arith.addf %219, %221 : vector<2x128xf32>
    %223 = vector.extract_strided_slice %222 {offsets = [0, 0], sizes = [2, 32], strides = [1, 1]} : vector<2x128xf32> to vector<2x32xf32>
    %cst_79 = arith.constant 5.000000e-01 : f32
    %224 = vector.broadcast %cst_79 : f32 to vector<2x32xf32>
    %225 = arith.mulf %224, %223 : vector<2x32xf32>
    %226 = math.tanh %225 : vector<2x32xf32>
    %cst_80 = arith.constant 5.000000e-01 : f32
    %227 = vector.broadcast %cst_80 : f32 to vector<2x32xf32>
    %228 = arith.mulf %227, %226 : vector<2x32xf32>
    %cst_81 = arith.constant 5.000000e-01 : f32
    %229 = vector.broadcast %cst_81 : f32 to vector<2x32xf32>
    %230 = arith.addf %228, %229 : vector<2x32xf32>
    %231 = vector.extract_strided_slice %222 {offsets = [0, 32], sizes = [2, 32], strides = [1, 1]} : vector<2x128xf32> to vector<2x32xf32>
    %cst_82 = arith.constant 5.000000e-01 : f32
    %232 = vector.broadcast %cst_82 : f32 to vector<2x32xf32>
    %233 = arith.mulf %232, %231 : vector<2x32xf32>
    %234 = math.tanh %233 : vector<2x32xf32>
    %cst_83 = arith.constant 5.000000e-01 : f32
    %235 = vector.broadcast %cst_83 : f32 to vector<2x32xf32>
    %236 = arith.mulf %235, %234 : vector<2x32xf32>
    %cst_84 = arith.constant 5.000000e-01 : f32
    %237 = vector.broadcast %cst_84 : f32 to vector<2x32xf32>
    %238 = arith.addf %236, %237 : vector<2x32xf32>
    %239 = vector.extract_strided_slice %222 {offsets = [0, 64], sizes = [2, 32], strides = [1, 1]} : vector<2x128xf32> to vector<2x32xf32>
    %240 = math.tanh %239 : vector<2x32xf32>
    %241 = vector.extract_strided_slice %222 {offsets = [0, 96], sizes = [2, 32], strides = [1, 1]} : vector<2x128xf32> to vector<2x32xf32>
    %cst_85 = arith.constant 5.000000e-01 : f32
    %242 = vector.broadcast %cst_85 : f32 to vector<2x32xf32>
    %243 = arith.mulf %242, %241 : vector<2x32xf32>
    %244 = math.tanh %243 : vector<2x32xf32>
    %cst_86 = arith.constant 5.000000e-01 : f32
    %245 = vector.broadcast %cst_86 : f32 to vector<2x32xf32>
    %246 = arith.mulf %245, %244 : vector<2x32xf32>
    %cst_87 = arith.constant 5.000000e-01 : f32
    %247 = vector.broadcast %cst_87 : f32 to vector<2x32xf32>
    %248 = arith.addf %246, %247 : vector<2x32xf32>
    %249 = arith.mulf %238, %209 : vector<2x32xf32>
    %250 = arith.mulf %230, %240 : vector<2x32xf32>
    %251 = arith.addf %249, %250 : vector<2x32xf32>
    %252 = math.tanh %251 : vector<2x32xf32>
    %253 = arith.mulf %248, %252 : vector<2x32xf32>
    %254 = arith.index_cast %c5_i32 : i32 to index
    %c0_88 = arith.constant 0 : index
    %c0_89 = arith.constant 0 : index
    %255 = vector.load %arg16[%254, %c0_88, %c0_89] : memref<8x2x32xf32, #tpu.memory_space<vmem>>, vector<1x2x32xf32>
    %256 = vector.shape_cast %255 : vector<1x2x32xf32> to vector<2x32xf32>
    %257 = vector.shape_cast %253 : vector<2x32xf32> to vector<1x2x32xf32>
    tpu.vector_store %arg16[%254, %c0_88, %c0_89], %257 {strides = array<i32>} : memref<8x2x32xf32, #tpu.memory_space<vmem>>, vector<1x2x32xf32>,
    %c6_i32 = arith.constant 6 : i32
    %258 = arith.index_cast %c6_i32 : i32 to index
    %c0_90 = arith.constant 0 : index
    %c0_91 = arith.constant 0 : index
    %259 = vector.load %arg2[%258, %c0_90, %c0_91] : memref<8x2x128xbf16, #tpu.memory_space<vmem>>, vector<1x2x128xbf16>
    %260 = vector.shape_cast %259 : vector<1x2x128xbf16> to vector<2x128xbf16>
    %261 = arith.extf %260 : vector<2x128xbf16> to vector<2x128xf32>
    %262 = arith.truncf %253 : vector<2x32xf32> to vector<2x32xbf16>
    %cst_92 = arith.constant dense<0.000000e+00> : vector<2x128xf32>
    %263 = tpu.matmul %262, %3, %cst_92 {dimension_numbers = #tpu.dot_dimension_numbers<[1], [0], [0], [1], [0, 0, 1, 1], [], []>} : vector<2x32xbf16>, vector<32x128xbf16>, vector<2x128xf32> -> vector<2x128xf32>
    %264 = arith.addf %261, %263 : vector<2x128xf32>
    %265 = vector.extract_strided_slice %264 {offsets = [0, 0], sizes = [2, 32], strides = [1, 1]} : vector<2x128xf32> to vector<2x32xf32>
    %cst_93 = arith.constant 5.000000e-01 : f32
    %266 = vector.broadcast %cst_93 : f32 to vector<2x32xf32>
    %267 = arith.mulf %266, %265 : vector<2x32xf32>
    %268 = math.tanh %267 : vector<2x32xf32>
    %cst_94 = arith.constant 5.000000e-01 : f32
    %269 = vector.broadcast %cst_94 : f32 to vector<2x32xf32>
    %270 = arith.mulf %269, %268 : vector<2x32xf32>
    %cst_95 = arith.constant 5.000000e-01 : f32
    %271 = vector.broadcast %cst_95 : f32 to vector<2x32xf32>
    %272 = arith.addf %270, %271 : vector<2x32xf32>
    %273 = vector.extract_strided_slice %264 {offsets = [0, 32], sizes = [2, 32], strides = [1, 1]} : vector<2x128xf32> to vector<2x32xf32>
    %cst_96 = arith.constant 5.000000e-01 : f32
    %274 = vector.broadcast %cst_96 : f32 to vector<2x32xf32>
    %275 = arith.mulf %274, %273 : vector<2x32xf32>
    %276 = math.tanh %275 : vector<2x32xf32>
    %cst_97 = arith.constant 5.000000e-01 : f32
    %277 = vector.broadcast %cst_97 : f32 to vector<2x32xf32>
    %278 = arith.mulf %277, %276 : vector<2x32xf32>
    %cst_98 = arith.constant 5.000000e-01 : f32
    %279 = vector.broadcast %cst_98 : f32 to vector<2x32xf32>
    %280 = arith.addf %278, %279 : vector<2x32xf32>
    %281 = vector.extract_strided_slice %264 {offsets = [0, 64], sizes = [2, 32], strides = [1, 1]} : vector<2x128xf32> to vector<2x32xf32>
    %282 = math.tanh %281 : vector<2x32xf32>
    %283 = vector.extract_strided_slice %264 {offsets = [0, 96], sizes = [2, 32], strides = [1, 1]} : vector<2x128xf32> to vector<2x32xf32>
    %cst_99 = arith.constant 5.000000e-01 : f32
    %284 = vector.broadcast %cst_99 : f32 to vector<2x32xf32>
    %285 = arith.mulf %284, %283 : vector<2x32xf32>
    %286 = math.tanh %285 : vector<2x32xf32>
    %cst_100 = arith.constant 5.000000e-01 : f32
    %287 = vector.broadcast %cst_100 : f32 to vector<2x32xf32>
    %288 = arith.mulf %287, %286 : vector<2x32xf32>
    %cst_101 = arith.constant 5.000000e-01 : f32
    %289 = vector.broadcast %cst_101 : f32 to vector<2x32xf32>
    %290 = arith.addf %288, %289 : vector<2x32xf32>
    %291 = arith.mulf %280, %251 : vector<2x32xf32>
    %292 = arith.mulf %272, %282 : vector<2x32xf32>
    %293 = arith.addf %291, %292 : vector<2x32xf32>
    %294 = math.tanh %293 : vector<2x32xf32>
    %295 = arith.mulf %290, %294 : vector<2x32xf32>
    %296 = arith.index_cast %c6_i32 : i32 to index
    %c0_102 = arith.constant 0 : index
    %c0_103 = arith.constant 0 : index
    %297 = vector.load %arg16[%296, %c0_102, %c0_103] : memref<8x2x32xf32, #tpu.memory_space<vmem>>, vector<1x2x32xf32>
    %298 = vector.shape_cast %297 : vector<1x2x32xf32> to vector<2x32xf32>
    %299 = vector.shape_cast %295 : vector<2x32xf32> to vector<1x2x32xf32>
    tpu.vector_store %arg16[%296, %c0_102, %c0_103], %299 {strides = array<i32>} : memref<8x2x32xf32, #tpu.memory_space<vmem>>, vector<1x2x32xf32>,
    %c7_i32 = arith.constant 7 : i32
    %300 = arith.index_cast %c7_i32 : i32 to index
    %c0_104 = arith.constant 0 : index
    %c0_105 = arith.constant 0 : index
    %301 = vector.load %arg2[%300, %c0_104, %c0_105] : memref<8x2x128xbf16, #tpu.memory_space<vmem>>, vector<1x2x128xbf16>
    %302 = vector.shape_cast %301 : vector<1x2x128xbf16> to vector<2x128xbf16>
    %303 = arith.extf %302 : vector<2x128xbf16> to vector<2x128xf32>
    %304 = arith.truncf %295 : vector<2x32xf32> to vector<2x32xbf16>
    %cst_106 = arith.constant dense<0.000000e+00> : vector<2x128xf32>
    %305 = tpu.matmul %304, %3, %cst_106 {dimension_numbers = #tpu.dot_dimension_numbers<[1], [0], [0], [1], [0, 0, 1, 1], [], []>} : vector<2x32xbf16>, vector<32x128xbf16>, vector<2x128xf32> -> vector<2x128xf32>
    %306 = arith.addf %303, %305 : vector<2x128xf32>
    %307 = vector.extract_strided_slice %306 {offsets = [0, 0], sizes = [2, 32], strides = [1, 1]} : vector<2x128xf32> to vector<2x32xf32>
    %cst_107 = arith.constant 5.000000e-01 : f32
    %308 = vector.broadcast %cst_107 : f32 to vector<2x32xf32>
    %309 = arith.mulf %308, %307 : vector<2x32xf32>
    %310 = math.tanh %309 : vector<2x32xf32>
    %cst_108 = arith.constant 5.000000e-01 : f32
    %311 = vector.broadcast %cst_108 : f32 to vector<2x32xf32>
    %312 = arith.mulf %311, %310 : vector<2x32xf32>
    %cst_109 = arith.constant 5.000000e-01 : f32
    %313 = vector.broadcast %cst_109 : f32 to vector<2x32xf32>
    %314 = arith.addf %312, %313 : vector<2x32xf32>
    %315 = vector.extract_strided_slice %306 {offsets = [0, 32], sizes = [2, 32], strides = [1, 1]} : vector<2x128xf32> to vector<2x32xf32>
    %cst_110 = arith.constant 5.000000e-01 : f32
    %316 = vector.broadcast %cst_110 : f32 to vector<2x32xf32>
    %317 = arith.mulf %316, %315 : vector<2x32xf32>
    %318 = math.tanh %317 : vector<2x32xf32>
    %cst_111 = arith.constant 5.000000e-01 : f32
    %319 = vector.broadcast %cst_111 : f32 to vector<2x32xf32>
    %320 = arith.mulf %319, %318 : vector<2x32xf32>
    %cst_112 = arith.constant 5.000000e-01 : f32
    %321 = vector.broadcast %cst_112 : f32 to vector<2x32xf32>
    %322 = arith.addf %320, %321 : vector<2x32xf32>
    %323 = vector.extract_strided_slice %306 {offsets = [0, 64], sizes = [2, 32], strides = [1, 1]} : vector<2x128xf32> to vector<2x32xf32>
    %324 = math.tanh %323 : vector<2x32xf32>
    %325 = vector.extract_strided_slice %306 {offsets = [0, 96], sizes = [2, 32], strides = [1, 1]} : vector<2x128xf32> to vector<2x32xf32>
    %cst_113 = arith.constant 5.000000e-01 : f32
    %326 = vector.broadcast %cst_113 : f32 to vector<2x32xf32>
    %327 = arith.mulf %326, %325 : vector<2x32xf32>
    %328 = math.tanh %327 : vector<2x32xf32>
    %cst_114 = arith.constant 5.000000e-01 : f32
    %329 = vector.broadcast %cst_114 : f32 to vector<2x32xf32>
    %330 = arith.mulf %329, %328 : vector<2x32xf32>
    %cst_115 = arith.constant 5.000000e-01 : f32
    %331 = vector.broadcast %cst_115 : f32 to vector<2x32xf32>
    %332 = arith.addf %330, %331 : vector<2x32xf32>
    %333 = arith.mulf %322, %293 : vector<2x32xf32>
    %334 = arith.mulf %314, %324 : vector<2x32xf32>
    %335 = arith.addf %333, %334 : vector<2x32xf32>
    %336 = math.tanh %335 : vector<2x32xf32>
    %337 = arith.mulf %332, %336 : vector<2x32xf32>
    %338 = arith.index_cast %c7_i32 : i32 to index
    %c0_116 = arith.constant 0 : index
    %c0_117 = arith.constant 0 : index
    %339 = vector.load %arg16[%338, %c0_116, %c0_117] : memref<8x2x32xf32, #tpu.memory_space<vmem>>, vector<1x2x32xf32>
    %340 = vector.shape_cast %339 : vector<1x2x32xf32> to vector<2x32xf32>
    %341 = vector.shape_cast %337 : vector<2x32xf32> to vector<1x2x32xf32>
    tpu.vector_store %arg16[%338, %c0_116, %c0_117], %341 {strides = array<i32>} : memref<8x2x32xf32, #tpu.memory_space<vmem>>, vector<1x2x32xf32>,
    %c8_i32 = arith.constant 8 : i32
    %c0_118 = arith.constant 0 : index
    %c0_119 = arith.constant 0 : index
    %342 = vector.load %arg14[%c0_118, %c0_119] : memref<2x32xf32, #tpu.memory_space<vmem>>, vector<2x32xf32>
    tpu.vector_store %arg14[%c0_118, %c0_119], %337 {strides = array<i32>} : memref<2x32xf32, #tpu.memory_space<vmem>>, vector<2x32xf32>,
    %c0_120 = arith.constant 0 : index
    %c0_121 = arith.constant 0 : index
    %343 = vector.load %arg15[%c0_120, %c0_121] : memref<2x32xf32, #tpu.memory_space<vmem>>, vector<2x32xf32>
    tpu.vector_store %arg15[%c0_120, %c0_121], %335 {strides = array<i32>} : memref<2x32xf32, #tpu.memory_space<vmem>>, vector<2x32xf32>,
    %c1_i32_122 = arith.constant 1 : i32
    %344 = arith.cmpi eq, %arg1, %c1_i32_122 : i32
    %345 = arith.extui %344 : i1 to i32
    %c0_i32_123 = arith.constant 0 : i32
    %346 = arith.cmpi ne, %345, %c0_i32_123 : i32
    scf.if %346 {
      %c0_149 = arith.constant 0 : index
      %c0_150 = arith.constant 0 : index
      %378 = vector.load %arg12[%c0_149, %c0_150] : memref<2x32xf32, #tpu.memory_space<vmem>>, vector<2x32xf32>
      tpu.vector_store %arg12[%c0_149, %c0_150], %337 {strides = array<i32>} : memref<2x32xf32, #tpu.memory_space<vmem>>, vector<2x32xf32>,
      %c0_151 = arith.constant 0 : index
      %c0_152 = arith.constant 0 : index
      %379 = vector.load %arg13[%c0_151, %c0_152] : memref<2x32xf32, #tpu.memory_space<vmem>>, vector<2x32xf32>
      tpu.vector_store %arg13[%c0_151, %c0_152], %335 {strides = array<i32>} : memref<2x32xf32, #tpu.memory_space<vmem>>, vector<2x32xf32>,
    } else {
    }
    %c0_124 = arith.constant 0 : index
    %c0_125 = arith.constant 0 : index
    %c0_126 = arith.constant 0 : index
    %347 = vector.load %arg16[%c0_124, %c0_125, %c0_126] : memref<8x2x32xf32, #tpu.memory_space<vmem>>, vector<8x2x32xf32>
    %348 = arith.truncf %347 : vector<8x2x32xf32> to vector<8x2x32xbf16>
    %c0_127 = arith.constant 0 : index
    %c0_128 = arith.constant 0 : index
    %c0_129 = arith.constant 0 : index
    %349 = vector.load %arg6[%c0_127, %c0_128, %c0_129] : memref<2x8x32xbf16, #tpu.memory_space<vmem>>, vector<2x8x32xbf16>
    %c0_130 = arith.constant 0 : index
    %c0_131 = arith.constant 0 : index
    %c0_132 = arith.constant 0 : index
    %350 = vector.load %arg7[%c0_130, %c0_131, %c0_132] : memref<2x1x8xf32, #tpu.memory_space<vmem>>, vector<2x1x8xf32>
    %c0_133 = arith.constant 0 : index
    %c0_134 = arith.constant 0 : index
    %351 = vector.load %arg8[%c0_133, %c0_134] : memref<32x32xbf16, #tpu.memory_space<vmem>>, vector<32x32xbf16>
    %cst_135 = arith.constant dense<0.000000e+00> : vector<8x2x32xf32>
    %352 = tpu.matmul %348, %351, %cst_135 {dimension_numbers = #tpu.dot_dimension_numbers<[2], [0], [0, 1], [1], [0, 0, 0, 1, 1, 1], [], []>} : vector<8x2x32xbf16>, vector<32x32xbf16>, vector<8x2x32xf32> -> vector<8x2x32xf32>
    %353 = arith.truncf %352 : vector<8x2x32xf32> to vector<8x2x32xbf16>
    %cst_136 = arith.constant dense<0.000000e+00> : vector<2x8x8xf32>
    %354 = tpu.matmul %353, %349, %cst_136 {dimension_numbers = #tpu.dot_dimension_numbers<[2], [2], [0], [1], [0, 1, 0, 0, 1, 1], [1], [0]>} : vector<8x2x32xbf16>, vector<2x8x32xbf16>, vector<2x8x8xf32> -> vector<2x8x8xf32>
    %355 = vector.broadcast %350 : vector<2x1x8xf32> to vector<2x8x8xf32>
    %356 = arith.addf %354, %355 : vector<2x8x8xf32>
    %cst_137 = arith.constant dense<0xFF800000> : vector<2x8xf32>
    %357 = vector.multi_reduction <maximumf>, %356, %cst_137 [2] : vector<2x8x8xf32> to vector<2x8xf32>
    %358 = vector.shape_cast %357 : vector<2x8xf32> to vector<2x8x1xf32>
    %359 = vector.broadcast %358 : vector<2x8x1xf32> to vector<2x8x8xf32>
    %360 = arith.subf %356, %359 : vector<2x8x8xf32>
    %361 = math.exp %360 : vector<2x8x8xf32>
    %cst_138 = arith.constant dense<0.000000e+00> : vector<2x8xf32>
    %362 = vector.multi_reduction <add>, %361, %cst_138 [2] : vector<2x8x8xf32> to vector<2x8xf32>
    %363 = vector.shape_cast %362 : vector<2x8xf32> to vector<2x8x1xf32>
    %364 = tpu.reciprocal %363 {approx = true} : vector<2x8x1xf32> -> vector<2x8x1xf32>
    %365 = vector.broadcast %364 : vector<2x8x1xf32> to vector<2x8x8xf32>
    %366 = arith.mulf %361, %365 : vector<2x8x8xf32>
    %367 = arith.truncf %366 : vector<2x8x8xf32> to vector<2x8x8xbf16>
    %cst_139 = arith.constant dense<0.000000e+00> : vector<2x8x32xf32>
    %368 = tpu.matmul %367, %349, %cst_139 {dimension_numbers = #tpu.dot_dimension_numbers<[2], [1], [1], [2], [0, 0, 0, 1, 1, 2], [0], [0]>} : vector<2x8x8xbf16>, vector<2x8x32xbf16>, vector<2x8x32xf32> -> vector<2x8x32xf32>
    %369 = tpu.transpose %348, [1, 0, 2] : vector<8x2x32xbf16> -> vector<2x8x32xbf16>
    %370 = arith.truncf %368 : vector<2x8x32xf32> to vector<2x8x32xbf16>
    %c0_140 = arith.constant 0 : index
    %c0_141 = arith.constant 0 : index
    %371 = vector.load %arg9[%c0_140, %c0_141] : memref<32x32xbf16, #tpu.memory_space<vmem>>, vector<32x32xbf16>
    %cst_142 = arith.constant dense<0.000000e+00> : vector<2x8x32xf32>
    %372 = tpu.matmul %370, %371, %cst_142 {dimension_numbers = #tpu.dot_dimension_numbers<[2], [0], [0, 1], [1], [0, 0, 0, 1, 1, 1], [], []>} : vector<2x8x32xbf16>, vector<32x32xbf16>, vector<2x8x32xf32> -> vector<2x8x32xf32>
    %c0_143 = arith.constant 0 : index
    %c0_144 = arith.constant 0 : index
    %373 = vector.load %arg10[%c0_143, %c0_144] : memref<32x32xbf16, #tpu.memory_space<vmem>>, vector<32x32xbf16>
    %cst_145 = arith.constant dense<0.000000e+00> : vector<2x8x32xf32>
    %374 = tpu.matmul %369, %373, %cst_145 {dimension_numbers = #tpu.dot_dimension_numbers<[2], [0], [0, 1], [1], [0, 0, 0, 1, 1, 1], [], []>} : vector<2x8x32xbf16>, vector<32x32xbf16>, vector<2x8x32xf32> -> vector<2x8x32xf32>
    %375 = arith.addf %372, %374 : vector<2x8x32xf32>
    %376 = math.tanh %375 : vector<2x8x32xf32>
    %c0_146 = arith.constant 0 : index
    %c0_147 = arith.constant 0 : index
    %c0_148 = arith.constant 0 : index
    %377 = vector.load %arg11[%c0_146, %c0_147, %c0_148] : memref<2x8x32xf32, #tpu.memory_space<vmem>>, vector<2x8x32xf32>
    tpu.vector_store %arg11[%c0_146, %c0_147, %c0_148], %376 {strides = array<i32>} : memref<2x8x32xf32, #tpu.memory_space<vmem>>, vector<2x8x32xf32>,
    return
  }
  func.func @transform_0(%arg0: i32, %arg1: i32) -> (i32, i32, i32) {
    %c0_i32 = arith.constant 0 : i32
    %c0_i32_0 = arith.constant 0 : i32
    return %arg1, %arg0, %c0_i32 : i32, i32, i32
  }
  func.func @transform_1(%arg0: i32, %arg1: i32) -> (i32, i32) {
    %c0_i32 = arith.constant 0 : i32
    %c0_i32_0 = arith.constant 0 : i32
    return %arg0, %c0_i32 : i32, i32
  }
  func.func @transform_2(%arg0: i32, %arg1: i32) -> (i32, i32) {
    %c0_i32 = arith.constant 0 : i32
    %c0_i32_0 = arith.constant 0 : i32
    return %arg0, %c0_i32 : i32, i32
  }
  func.func @transform_3(%arg0: i32, %arg1: i32) -> (i32, i32) {
    %c0_i32 = arith.constant 0 : i32
    %c0_i32_0 = arith.constant 0 : i32
    %c0_i32_1 = arith.constant 0 : i32
    return %c0_i32, %c0_i32_0 : i32, i32
  }
  func.func @transform_4(%arg0: i32, %arg1: i32) -> (i32, i32, i32) {
    %c0_i32 = arith.constant 0 : i32
    %c0_i32_0 = arith.constant 0 : i32
    %c0_i32_1 = arith.constant 0 : i32
    return %arg0, %c0_i32, %c0_i32_0 : i32, i32, i32
  }
  func.func @transform_5(%arg0: i32, %arg1: i32) -> (i32, i32, i32) {
    %c0_i32 = arith.constant 0 : i32
    %c0_i32_0 = arith.constant 0 : i32
    %c0_i32_1 = arith.constant 0 : i32
    return %arg0, %c0_i32, %c0_i32_0 : i32, i32, i32
  }
  func.func @transform_6(%arg0: i32, %arg1: i32) -> (i32, i32) {
    %c0_i32 = arith.constant 0 : i32
    %c0_i32_0 = arith.constant 0 : i32
    %c0_i32_1 = arith.constant 0 : i32
    return %c0_i32, %c0_i32_0 : i32, i32
  }
  func.func @transform_7(%arg0: i32, %arg1: i32) -> (i32, i32) {
    %c0_i32 = arith.constant 0 : i32
    %c0_i32_0 = arith.constant 0 : i32
    %c0_i32_1 = arith.constant 0 : i32
    return %c0_i32, %c0_i32_0 : i32, i32
  }
  func.func @transform_8(%arg0: i32, %arg1: i32) -> (i32, i32) {
    %c0_i32 = arith.constant 0 : i32
    %c0_i32_0 = arith.constant 0 : i32
    %c0_i32_1 = arith.constant 0 : i32
    return %c0_i32, %c0_i32_0 : i32, i32
  }
  func.func @transform_9(%arg0: i32, %arg1: i32) -> (i32, i32, i32) {
    %c0_i32 = arith.constant 0 : i32
    %c0_i32_0 = arith.constant 0 : i32
    return %arg0, %arg1, %c0_i32 : i32, i32, i32
  }
  func.func @transform_10(%arg0: i32, %arg1: i32) -> (i32, i32) {
    %c0_i32 = arith.constant 0 : i32
    %c0_i32_0 = arith.constant 0 : i32
    return %arg0, %c0_i32 : i32, i32
  }
  func.func @transform_11(%arg0: i32, %arg1: i32) -> (i32, i32) {
    %c0_i32 = arith.constant 0 : i32
    %c0_i32_0 = arith.constant 0 : i32
    return %arg0, %c0_i32 : i32, i32
  }
}

</mosaic_0001>

<llo_original>
// kernel: tpu_custom_call.1
$region0: #{tpu_custom_call.1}
  #allocation0 [shape = 'u32[]', space=smem, size = 0x4, offset = 0x4, fixed_abs, tag = 'smem constant byte address 0x4 - core index']
  #allocation1 [shape = 'u32[72,128]{1,0:T(1,128)}', space=vmem, size = 0x9000, scoped, tag = 'internal scratch']
  #allocation2 [shape = 'f32[2,32]{1,0:T(2,128)}', space=vmem, size = 0x400, scoped, tag = 'scratch operand']
  #allocation3 [shape = 'f32[2,32]{1,0:T(2,128)}', space=vmem, size = 0x400, scoped, tag = 'scratch operand']
  #allocation4 [shape = 'f32[8,2,32]{2,1,0:T(2,128)}', space=vmem, size = 0x2000, scoped, tag = 'scratch operand']
  %s0 = inlined_call_operand.hbm [shape: bf16[16,2,128], index: 0, kind: input, shape index: {}]
  %s1 = inlined_call_operand.hbm [shape: f32[2,32], index: 1, kind: input, shape index: {}]
  %s2 = inlined_call_operand.hbm [shape: f32[2,32], index: 2, kind: input, shape index: {}]
  %s3 = inlined_call_operand.hbm [shape: bf16[32,128], index: 3, kind: input, shape index: {}]
  %s4 = inlined_call_operand.hbm [shape: bf16[2,8,32], index: 4, kind: input, shape index: {}]
  %s5 = inlined_call_operand.vmem [shape: f32[2,1,8], index: 5, kind: input, shape index: {}]
  %s6 = inlined_call_operand.hbm [shape: bf16[32,32], index: 6, kind: input, shape index: {}]
  %s7 = inlined_call_operand.hbm [shape: bf16[32,32], index: 7, kind: input, shape index: {}]
  %s8 = inlined_call_operand.hbm [shape: bf16[32,32], index: 8, kind: input, shape index: {}]
  %s9 = inlined_call_operand.hbm [shape: f32[2,16,32], index: 9, kind: output, shape index: {0}]
  %s10 = inlined_call_operand.hbm [shape: f32[2,32], index: 10, kind: output, shape index: {1}]
  %s11 = inlined_call_operand.hbm [shape: f32[2,32], index: 11, kind: output, shape index: {2}]
  %12 = xla_tuple %s9, %s10, %s11
  %s13 = sld [smem:[#allocation0]]
  $region125: #{tpu_custom_call.1} parent=0
    _
  %s15 = ssub.s32 1, %s13
  %s16 = scalar_select 0, %s15, %s13
  $region1: #{tpu_custom_call.1} parent=0
    #allocation5 [shape = 'u8[8192]{0}', space=vmem, size = 0x2000, scoped, tag = 'input window, operand 0']
    #allocation6 [shape = 's32[2]{0}', space=sflag, size = 0x8, scoped, tag = 'scoped memory for tpu_custom_call.1']
    #allocation7 [shape = 's32[2]{0}', space=sflag, size = 0x8, scoped, tag = 'scoped memory for tpu_custom_call.1']
    #allocation8 [shape = 'u8[1024]{0}', space=vmem, size = 0x400, scoped, tag = 'input window, operand 1, single buffered']
    #allocation9 [shape = 's32[1]{0}', space=sflag, size = 0x4, scoped, tag = 'scoped memory for tpu_custom_call.1']
    #allocation10 [shape = 'u8[1024]{0}', space=vmem, size = 0x400, scoped, tag = 'input window, operand 2, single buffered']
    #allocation11 [shape = 'u8[8192]{0}', space=vmem, size = 0x2000, scoped, tag = 'input window, operand 3, single buffered']
    #allocation12 [shape = 's32[1]{0}', space=sflag, size = 0x4, scoped, tag = 'scoped memory for tpu_custom_call.1']
    #allocation13 [shape = 'u8[4096]{0}', space=vmem, size = 0x1000, scoped, tag = 'input window, operand 4, single buffered']
    #allocation14 [shape = 'u8[8192]{0}', space=vmem, size = 0x2000, scoped, tag = 'input window, operand 6, single buffered']
    #allocation15 [shape = 's32[1]{0}', space=sflag, size = 0x4, scoped, tag = 'scoped memory for tpu_custom_call.1']
    #allocation16 [shape = 'u8[8192]{0}', space=vmem, size = 0x2000, scoped, tag = 'input window, operand 7, single buffered']
    #allocation17 [shape = 'u8[8192]{0}', space=vmem, size = 0x2000, scoped, tag = 'input window, operand 8, single buffered']
    #allocation18 [shape = 's32[1]{0}', space=sflag, size = 0x4, scoped, tag = 'scoped memory for tpu_custom_call.1']
    #allocation19 [shape = 'u8[16384]{0}', space=vmem, size = 0x4000, scoped, tag = 'output window, operand 0']
    #allocation20 [shape = 'u8[1024]{0}', space=vmem, size = 0x400, scoped, tag = 'output window, operand 1, single buffered']
    #allocation21 [shape = 's32[1]{0}', space=sflag, size = 0x4, scoped, tag = 'scoped memory for tpu_custom_call.1']
    #allocation22 [shape = 'u8[1024]{0}', space=vmem, size = 0x400, scoped, tag = 'output window, operand 2, single buffered']
    %17 = vsyncpa [#allocation6], 0
    %s18 = scalar_lea.sflag [#allocation6], 1
    %19 = vsyncpa %s18, 0
    %20 = vsyncpa [#allocation9], 0
    %21 = vsyncpa [#allocation12], 0
    %22 = vsyncpa [#allocation15], 0
    %23 = vsyncpa [#allocation18], 0
    %24 = vsyncpa [#allocation7], 0
    %s25 = scalar_lea.sflag [#allocation7], 1
    %26 = vsyncpa %s25, 0
    %27 = vsyncpa [#allocation21], 0
    loop: start=0, step=1, limit=4
    $region2: #{tpu_custom_call.1} parent=1 // loop_pre_header
      _
    $region3: #{tpu_custom_call.1} parent=1 // loop_header
      %s29 = sphi 0, %s33
      %p30 = scmp.ge.s32.totalorder %s29, 4
      %s36 = sphi 0, %s48
      %s37 = sphi 0, %s44
      %s38 = sphi 0, %s36
      %s39 = sphi 0, %s37
      %s40 = sphi 0, %s38
      %s41 = sphi 0, %s39
      %s53 = sphi 0, %s55
      %s56 = sphi 0, %s53
      %s57 = sphi 0, %s56
      %s73 = sphi 0, %s57
      %s79 = sphi 0, %s81
      %s82 = sphi 0, %s79
      %s83 = sphi 0, %s82
      %s99 = sphi 0, %s83
      %s105 = sphi 0, %s107
      %s108 = sphi 0, %s105
      %s109 = sphi 0, %s108
      %s125 = sphi 0, %s109
      %s129 = sphi 0, %s129
      %s131 = sphi 0, %s129
      %s132 = sphi 0, %s131
      %s146 = sphi 0, %s132
      %s152 = sphi 0, %s154
      %s155 = sphi 0, %s152
      %s156 = sphi 0, %s155
      %s172 = sphi 0, %s156
      %s178 = sphi 0, %s180
      %s181 = sphi 0, %s178
      %s182 = sphi 0, %s181
      %s198 = sphi 0, %s182
      %s202 = sphi 0, %s202
      %s204 = sphi 0, %s202
      %s205 = sphi 0, %s204
      %s219 = sphi 0, %s205
      %s223 = sphi 0, %s223
      %s225 = sphi 0, %s223
      %s226 = sphi 0, %s225
      %s240 = sphi 0, %s226
      %s244 = sphi 0, %s244
      %s246 = sphi 0, %s244
      %s247 = sphi 0, %s246
      %s261 = sphi 0, %s247
      %s269 = sphi 0, %s271
      %s272 = sphi 0, %s269
      %s273 = sphi 0, %s272
      %s289 = sphi 0, %s273
      %s295 = sphi 0, %s297
      %s298 = sphi 0, %s295
      %s299 = sphi 0, %s298
      %s315 = sphi 0, %s299
      %s321 = sphi 0, %s323
      %s324 = sphi 0, %s321
      %s325 = sphi 0, %s324
      %s341 = sphi 0, %s325
    $region4: #{tpu_custom_call.1} parent=1 // loop_header_branch
      %32 = sbr.rel (%p30) target = $region8
    $region5: #{tpu_custom_call.1} parent=1 // loop_body
      %s34 = ssub.s32 %s29, 1
      %s35 = ssub.s32 %s29, 2
      %s42 = sadd.s32 1, %s37
      %p43 = scmp.ge.s32.totalorder %s42, 2
      %s44 = scalar_select %p43, 0, %s42
      %s45 = sadd.s32 1, %s36
      %s46 = scalar_select %p43, %s45, %s36
      %p47 = scmp.ge.s32.totalorder %s46, 1
      %s48 = scalar_select %p47, 0, %s46
      %s49 = ssub.s32 %s37, %s44
      %s50 = ssub.s32 %s36, %s48
      %s51 = sor.u32 %s49, %s50
      %p52 = scmp.eq.s32.totalorder %s51, 0
      %s54 = sadd.s32 %s53, 1
      %s55 = scalar_select %p52, %s53, %s54
      %p58 = pneg %p52
      %p59 = scmp.eq.s32.totalorder %s29, 1
      %p60 = por %p58, %p59
      %p61 = scmp.ne.s32.totalorder %s53, %s56
      %p62 = scmp.eq.s32.totalorder %s29, 0
      %p63 = por %p61, %p62
      %p64 = scmp.ne.s32.totalorder %s53, %s56
      %p65 = scmp.eq.s32.totalorder %s34, 1
      %p66 = por %p64, %p65
      %p67 = scmp.ne.s32.totalorder %s56, %s57
      %p68 = scmp.eq.s32.totalorder %s34, 0
      %p69 = por %p67, %p68
      %p70 = scmp.ne.s32.totalorder %s56, %s57
      %p71 = scmp.eq.s32.totalorder %s35, 1
      %p72 = por %p70, %p71
      %p74 = scmp.ne.s32.totalorder %s57, %s73
      %p75 = scmp.eq.s32.totalorder %s35, 0
      %p76 = por %p74, %p75
      %s77 = ssub.s32 %s36, %s48
      %p78 = scmp.eq.s32.totalorder %s77, 0
      %s80 = sadd.s32 %s79, 1
      %s81 = scalar_select %p78, %s79, %s80
      %p84 = pneg %p78
      %p85 = scmp.eq.s32.totalorder %s29, 1
      %p86 = por %p84, %p85
      %p87 = scmp.ne.s32.totalorder %s79, %s82
      %p88 = scmp.eq.s32.totalorder %s29, 0
      %p89 = por %p87, %p88
      %p90 = scmp.ne.s32.totalorder %s79, %s82
      %p91 = scmp.eq.s32.totalorder %s34, 1
      %p92 = por %p90, %p91
      %p93 = scmp.ne.s32.totalorder %s82, %s83
      %p94 = scmp.eq.s32.totalorder %s34, 0
      %p95 = por %p93, %p94
      %p96 = scmp.ne.s32.totalorder %s82, %s83
      %p97 = scmp.eq.s32.totalorder %s35, 1
      %p98 = por %p96, %p97
      %p100 = scmp.ne.s32.totalorder %s83, %s99
      %p101 = scmp.eq.s32.totalorder %s35, 0
      %p102 = por %p100, %p101
      %s103 = ssub.s32 %s36, %s48
      %p104 = scmp.eq.s32.totalorder %s103, 0
      %s106 = sadd.s32 %s105, 1
      %s107 = scalar_select %p104, %s105, %s106
      %p110 = pneg %p104
      %p111 = scmp.eq.s32.totalorder %s29, 1
      %p112 = por %p110, %p111
      %p113 = scmp.ne.s32.totalorder %s105, %s108
      %p114 = scmp.eq.s32.totalorder %s29, 0
      %p115 = por %p113, %p114
      %p116 = scmp.ne.s32.totalorder %s105, %s108
      %p117 = scmp.eq.s32.totalorder %s34, 1
      %p118 = por %p116, %p117
      %p119 = scmp.ne.s32.totalorder %s108, %s109
      %p120 = scmp.eq.s32.totalorder %s34, 0
      %p121 = por %p119, %p120
      %p122 = scmp.ne.s32.totalorder %s108, %s109
      %p123 = scmp.eq.s32.totalorder %s35, 1
      %p124 = por %p122, %p123
      %p126 = scmp.ne.s32.totalorder %s109, %s125
      %p127 = scmp.eq.s32.totalorder %s35, 0
      %p128 = por %p126, %p127
      %s130 = sadd.s32 %s129, 1
      %p133 = scmp.eq.s32.totalorder %s29, 1
      %p134 = scmp.ne.s32.totalorder %s129, %s131
      %p135 = scmp.eq.s32.totalorder %s29, 0
      %p136 = por %p134, %p135
      %p137 = scmp.ne.s32.totalorder %s129, %s131
      %p138 = scmp.eq.s32.totalorder %s34, 1
      %p139 = por %p137, %p138
      %p140 = scmp.ne.s32.totalorder %s131, %s132
      %p141 = scmp.eq.s32.totalorder %s34, 0
      %p142 = por %p140, %p141
      %p143 = scmp.ne.s32.totalorder %s131, %s132
      %p144 = scmp.eq.s32.totalorder %s35, 1
      %p145 = por %p143, %p144
      %p147 = scmp.ne.s32.totalorder %s132, %s146
      %p148 = scmp.eq.s32.totalorder %s35, 0
      %p149 = por %p147, %p148
      %s150 = ssub.s32 %s36, %s48
      %p151 = scmp.eq.s32.totalorder %s150, 0
      %s153 = sadd.s32 %s152, 1
      %s154 = scalar_select %p151, %s152, %s153
      %p157 = pneg %p151
      %p158 = scmp.eq.s32.totalorder %s29, 1
      %p159 = por %p157, %p158
      %p160 = scmp.ne.s32.totalorder %s152, %s155
      %p161 = scmp.eq.s32.totalorder %s29, 0
      %p162 = por %p160, %p161
      %p163 = scmp.ne.s32.totalorder %s152, %s155
      %p164 = scmp.eq.s32.totalorder %s34, 1
      %p165 = por %p163, %p164
      %p166 = scmp.ne.s32.totalorder %s155, %s156
      %p167 = scmp.eq.s32.totalorder %s34, 0
      %p168 = por %p166, %p167
      %p169 = scmp.ne.s32.totalorder %s155, %s156
      %p170 = scmp.eq.s32.totalorder %s35, 1
      %p171 = por %p169, %p170
      %p173 = scmp.ne.s32.totalorder %s156, %s172
      %p174 = scmp.eq.s32.totalorder %s35, 0
      %p175 = por %p173, %p174
      %s176 = ssub.s32 %s36, %s48
      %p177 = scmp.eq.s32.totalorder %s176, 0
      %s179 = sadd.s32 %s178, 1
      %s180 = scalar_select %p177, %s178, %s179
      %p183 = pneg %p177
      %p184 = scmp.eq.s32.totalorder %s29, 1
      %p185 = por %p183, %p184
      %p186 = scmp.ne.s32.totalorder %s178, %s181
      %p187 = scmp.eq.s32.totalorder %s29, 0
      %p188 = por %p186, %p187
      %p189 = scmp.ne.s32.totalorder %s178, %s181
      %p190 = scmp.eq.s32.totalorder %s34, 1
      %p191 = por %p189, %p190
      %p192 = scmp.ne.s32.totalorder %s181, %s182
      %p193 = scmp.eq.s32.totalorder %s34, 0
      %p194 = por %p192, %p193
      %p195 = scmp.ne.s32.totalorder %s181, %s182
      %p196 = scmp.eq.s32.totalorder %s35, 1
      %p197 = por %p195, %p196
      %p199 = scmp.ne.s32.totalorder %s182, %s198
      %p200 = scmp.eq.s32.totalorder %s35, 0
      %p201 = por %p199, %p200
      %s203 = sadd.s32 %s202, 1
      %p206 = scmp.eq.s32.totalorder %s29, 1
      %p207 = scmp.ne.s32.totalorder %s202, %s204
      %p208 = scmp.eq.s32.totalorder %s29, 0
      %p209 = por %p207, %p208
      %p210 = scmp.ne.s32.totalorder %s202, %s204
      %p211 = scmp.eq.s32.totalorder %s34, 1
      %p212 = por %p210, %p211
      %p213 = scmp.ne.s32.totalorder %s204, %s205
      %p214 = scmp.eq.s32.totalorder %s34, 0
      %p215 = por %p213, %p214
      %p216 = scmp.ne.s32.totalorder %s204, %s205
      %p217 = scmp.eq.s32.totalorder %s35, 1
      %p218 = por %p216, %p217
      %p220 = scmp.ne.s32.totalorder %s205, %s219
      %p221 = scmp.eq.s32.totalorder %s35, 0
      %p222 = por %p220, %p221
      %s224 = sadd.s32 %s223, 1
      %p227 = scmp.eq.s32.totalorder %s29, 1
      %p228 = scmp.ne.s32.totalorder %s223, %s225
      %p229 = scmp.eq.s32.totalorder %s29, 0
      %p230 = por %p228, %p229
      %p231 = scmp.ne.s32.totalorder %s223, %s225
      %p232 = scmp.eq.s32.totalorder %s34, 1
      %p233 = por %p231, %p232
      %p234 = scmp.ne.s32.totalorder %s225, %s226
      %p235 = scmp.eq.s32.totalorder %s34, 0
      %p236 = por %p234, %p235
      %p237 = scmp.ne.s32.totalorder %s225, %s226
      %p238 = scmp.eq.s32.totalorder %s35, 1
      %p239 = por %p237, %p238
      %p241 = scmp.ne.s32.totalorder %s226, %s240
      %p242 = scmp.eq.s32.totalorder %s35, 0
      %p243 = por %p241, %p242
      %s245 = sadd.s32 %s244, 1
      %p248 = scmp.eq.s32.totalorder %s29, 1
      %p249 = scmp.ne.s32.totalorder %s244, %s246
      %p250 = scmp.eq.s32.totalorder %s29, 0
      %p251 = por %p249, %p250
      %p252 = scmp.ne.s32.totalorder %s244, %s246
      %p253 = scmp.eq.s32.totalorder %s34, 1
      %p254 = por %p252, %p253
      %p255 = scmp.ne.s32.totalorder %s246, %s247
      %p256 = scmp.eq.s32.totalorder %s34, 0
      %p257 = por %p255, %p256
      %p258 = scmp.ne.s32.totalorder %s246, %s247
      %p259 = scmp.eq.s32.totalorder %s35, 1
      %p260 = por %p258, %p259
      %p262 = scmp.ne.s32.totalorder %s247, %s261
      %p263 = scmp.eq.s32.totalorder %s35, 0
      %p264 = por %p262, %p263
      %s265 = ssub.s32 %s36, %s48
      %s266 = ssub.s32 %s37, %s44
      %s267 = sor.u32 %s265, %s266
      %p268 = scmp.eq.s32.totalorder %s267, 0
      %s270 = sadd.s32 %s269, 1
      %s271 = scalar_select %p268, %s269, %s270
      %p274 = pneg %p268
      %p275 = scmp.eq.s32.totalorder %s29, 1
      %p276 = por %p274, %p275
      %p277 = scmp.ne.s32.totalorder %s269, %s272
      %p278 = scmp.eq.s32.totalorder %s29, 0
      %p279 = por %p277, %p278
      %p280 = scmp.ne.s32.totalorder %s269, %s272
      %p281 = scmp.eq.s32.totalorder %s34, 1
      %p282 = por %p280, %p281
      %p283 = scmp.ne.s32.totalorder %s272, %s273
      %p284 = scmp.eq.s32.totalorder %s34, 0
      %p285 = por %p283, %p284
      %p286 = scmp.ne.s32.totalorder %s272, %s273
      %p287 = scmp.eq.s32.totalorder %s35, 1
      %p288 = por %p286, %p287
      %p290 = scmp.ne.s32.totalorder %s273, %s289
      %p291 = scmp.eq.s32.totalorder %s35, 0
      %p292 = por %p290, %p291
      %s293 = ssub.s32 %s36, %s48
      %p294 = scmp.eq.s32.totalorder %s293, 0
      %s296 = sadd.s32 %s295, 1
      %s297 = scalar_select %p294, %s295, %s296
      %p300 = pneg %p294
      %p301 = scmp.eq.s32.totalorder %s29, 1
      %p302 = por %p300, %p301
      %p303 = scmp.ne.s32.totalorder %s295, %s298
      %p304 = scmp.eq.s32.totalorder %s29, 0
      %p305 = por %p303, %p304
      %p306 = scmp.ne.s32.totalorder %s295, %s298
      %p307 = scmp.eq.s32.totalorder %s34, 1
      %p308 = por %p306, %p307
      %p309 = scmp.ne.s32.totalorder %s298, %s299
      %p310 = scmp.eq.s32.totalorder %s34, 0
      %p311 = por %p309, %p310
      %p312 = scmp.ne.s32.totalorder %s298, %s299
      %p313 = scmp.eq.s32.totalorder %s35, 1
      %p314 = por %p312, %p313
      %p316 = scmp.ne.s32.totalorder %s299, %s315
      %p317 = scmp.eq.s32.totalorder %s35, 0
      %p318 = por %p316, %p317
      %s319 = ssub.s32 %s36, %s48
      %p320 = scmp.eq.s32.totalorder %s319, 0
      %s322 = sadd.s32 %s321, 1
      %s323 = scalar_select %p320, %s321, %s322
      %p326 = pneg %p320
      %p327 = scmp.eq.s32.totalorder %s29, 1
      %p328 = por %p326, %p327
      %p329 = scmp.ne.s32.totalorder %s321, %s324
      %p330 = scmp.eq.s32.totalorder %s29, 0
      %p331 = por %p329, %p330
      %p332 = scmp.ne.s32.totalorder %s321, %s324
      %p333 = scmp.eq.s32.totalorder %s34, 1
      %p334 = por %p332, %p333
      %p335 = scmp.ne.s32.totalorder %s324, %s325
      %p336 = scmp.eq.s32.totalorder %s34, 0
      %p337 = por %p335, %p336
      %p338 = scmp.ne.s32.totalorder %s324, %s325
      %p339 = scmp.eq.s32.totalorder %s35, 1
      %p340 = por %p338, %p339
      %p342 = scmp.ne.s32.totalorder %s325, %s341
      %p343 = scmp.eq.s32.totalorder %s35, 0
      %p344 = por %p342, %p343
      %p345 = scmp.le.s32.totalorder 1, %s29
      %p346 = scmp.lt.s32.totalorder %s29, 3
      %p347 = pnand %p345, %p346
      %p348 = pneg %p347
      // Predicated region
      $region9: #{tpu_custom_call.1} parent=5 // pred_check
        _
      $region10: #{tpu_custom_call.1} parent=5 // pred_check_branch
        %350 = sbr.rel (%p347) target = $region12
      $region11: #{tpu_custom_call.1} parent=5 // pred_region
        %s351 = ssub.s32 %s29, 1
        // Predicated region
        $region13: #{tpu_custom_call.1} parent=11 // pred_check
          %p352 = pneg %p95
        $region14: #{tpu_custom_call.1} parent=11 // pred_check_branch
          %354 = sbr.rel (%p352) target = $region16
        $region15: #{tpu_custom_call.1} parent=11 // pred_region
          %356 = vsyncadd [#allocation9], 0
          %s357 = smul.addr %s38, 2
          %s358 = scalar_lea.hbm %s1, %s357
          %s360 = sshll.u32 %s358, 4
          %s361 = int_to_ptr.hbm [resolvable:$true] %s360
          %s362 = sshll.u32 [#allocation8], 4
          %s363 = int_to_ptr.vmem [resolvable:$true] %s362
          %365 = dma.hbm_to_vmem [thread:$0]  %s361, 32, %s363, [#allocation9]
        $region16: #{tpu_custom_call.1} parent=11 // pred_fallthru
          _
        // Predicated region
        $region17: #{tpu_custom_call.1} parent=11 // pred_check
          %p366 = pneg %p121
        $region18: #{tpu_custom_call.1} parent=11 // pred_check_branch
          %368 = sbr.rel (%p366) target = $region20
        $region19: #{tpu_custom_call.1} parent=11 // pred_region
          %370 = vsyncadd [#allocation9], 0
          %s371 = smul.addr %s38, 2
          %s372 = scalar_lea.hbm %s2, %s371
          %s374 = sshll.u32 %s372, 4
          %s375 = int_to_ptr.hbm [resolvable:$true] %s374
          %s376 = sshll.u32 [#allocation10], 4
          %s377 = int_to_ptr.vmem [resolvable:$true] %s376
          %379 = dma.hbm_to_vmem [thread:$0]  %s375, 32, %s377, [#allocation9]
        $region20: #{tpu_custom_call.1} parent=11 // pred_fallthru
          _
        // Predicated region
        $region21: #{tpu_custom_call.1} parent=11 // pred_check
          %p380 = pneg %p142
        $region22: #{tpu_custom_call.1} parent=11 // pred_check_branch
          %382 = sbr.rel (%p380) target = $region24
        $region23: #{tpu_custom_call.1} parent=11 // pred_region
          %384 = vsyncadd [#allocation12], 0
          %s385 = sshll.u32 %s3, 4
          %s386 = int_to_ptr.hbm [resolvable:$true] %s385
          %s387 = sshll.u32 [#allocation11], 4
          %s388 = int_to_ptr.vmem [resolvable:$true] %s387
          %393 = dma.hbm_to_vmem [thread:$0]  %s386, 256, %s388, [#allocation12], 64, 64, 4
        $region24: #{tpu_custom_call.1} parent=11 // pred_fallthru
          _
        // Predicated region
        $region25: #{tpu_custom_call.1} parent=11 // pred_check
          %p394 = pneg %p168
        $region26: #{tpu_custom_call.1} parent=11 // pred_check_branch
          %396 = sbr.rel (%p394) target = $region28
        $region27: #{tpu_custom_call.1} parent=11 // pred_region
          %s397 = smul.u32 2, %s38
          %399 = vsyncadd [#allocation12], 0
          %s400 = smul.addr %s397, 4
          %s401 = scalar_lea.hbm %s4, %s400
          %s402 = sshll.u32 %s401, 4
          %s403 = int_to_ptr.hbm [resolvable:$true] %s402
          %s404 = sshll.u32 [#allocation13], 4
          %s405 = int_to_ptr.vmem [resolvable:$true] %s404
          %410 = dma.hbm_to_vmem [thread:$0]  %s403, 128, %s405, [#allocation12], 64, 64, 4
        $region28: #{tpu_custom_call.1} parent=11 // pred_fallthru
          _
        // Predicated region
        $region29: #{tpu_custom_call.1} parent=11 // pred_check
          %p411 = pneg %p194
        $region30: #{tpu_custom_call.1} parent=11 // pred_check_branch
          %413 = sbr.rel (%p411) target = $region32
        $region31: #{tpu_custom_call.1} parent=11 // pred_region
          %s414 = smul.u32 2, %s38
          %p415 = scmp.lt.s32.totalorder %s414, 1
          %s416 = scalar_select %p415, %s414, 1
          %s417 = scalar_lea.vmem %s5, %s416
          %s418 = smul.u32 2, %s38
        $region32: #{tpu_custom_call.1} parent=11 // pred_fallthru
          _
        // Predicated region
        $region33: #{tpu_custom_call.1} parent=11 // pred_check
          %p419 = pneg %p215
        $region34: #{tpu_custom_call.1} parent=11 // pred_check_branch
          %421 = sbr.rel (%p419) target = $region36
        $region35: #{tpu_custom_call.1} parent=11 // pred_region
          %423 = vsyncadd [#allocation15], 0
          %s424 = sshll.u32 %s6, 4
          %s425 = int_to_ptr.hbm [resolvable:$true] %s424
          %s426 = sshll.u32 [#allocation14], 4
          %s427 = int_to_ptr.vmem [resolvable:$true] %s426
          %432 = dma.hbm_to_vmem [thread:$0]  %s425, 256, %s427, [#allocation15], 64, 64, 4
        $region36: #{tpu_custom_call.1} parent=11 // pred_fallthru
          _
        // Predicated region
        $region37: #{tpu_custom_call.1} parent=11 // pred_check
          %p433 = pneg %p236
        $region38: #{tpu_custom_call.1} parent=11 // pred_check_branch
          %435 = sbr.rel (%p433) target = $region40
        $region39: #{tpu_custom_call.1} parent=11 // pred_region
          %437 = vsyncadd [#allocation15], 0
          %s438 = sshll.u32 %s7, 4
          %s439 = int_to_ptr.hbm [resolvable:$true] %s438
          %s440 = sshll.u32 [#allocation16], 4
          %s441 = int_to_ptr.vmem [resolvable:$true] %s440
          %446 = dma.hbm_to_vmem [thread:$0]  %s439, 256, %s441, [#allocation15], 64, 64, 4
        $region40: #{tpu_custom_call.1} parent=11 // pred_fallthru
          _
        // Predicated region
        $region41: #{tpu_custom_call.1} parent=11 // pred_check
          %p447 = pneg %p257
        $region42: #{tpu_custom_call.1} parent=11 // pred_check_branch
          %449 = sbr.rel (%p447) target = $region44
        $region43: #{tpu_custom_call.1} parent=11 // pred_region
          %451 = vsyncadd [#allocation18], 0
          %s452 = sshll.u32 %s8, 4
          %s453 = int_to_ptr.hbm [resolvable:$true] %s452
          %s454 = sshll.u32 [#allocation17], 4
          %s455 = int_to_ptr.vmem [resolvable:$true] %s454
          %460 = dma.hbm_to_vmem [thread:$0]  %s453, 256, %s455, [#allocation18], 64, 64, 4
        $region44: #{tpu_custom_call.1} parent=11 // pred_fallthru
          _
      $region12: #{tpu_custom_call.1} parent=5 // pred_fallthru
        _
      %p461 = scmp.lt.s32.totalorder %s29, 2
      // Predicated region
      $region45: #{tpu_custom_call.1} parent=5 // pred_check
        %p462 = pneg %p461
      $region46: #{tpu_custom_call.1} parent=5 // pred_check_branch
        %464 = sbr.rel (%p462) target = $region48
      $region47: #{tpu_custom_call.1} parent=5 // pred_region
        // Predicated region
        $region49: #{tpu_custom_call.1} parent=47 // pred_check
          %p465 = pneg %p63
        $region50: #{tpu_custom_call.1} parent=47 // pred_check_branch
          %467 = sbr.rel (%p465) target = $region52
        $region51: #{tpu_custom_call.1} parent=47 // pred_region
          %s468 = sand.u32 %s53, 1
          %s469 = scalar_lea.sflag [#allocation6], %s468
          %s470 = sand.u32 %s53, 1
          %s471 = smul.addr %s470, 8
          %s472 = scalar_lea.vmem [#allocation5], %s471
          %s473 = smul.u32 8, %s37
          %475 = vsyncadd %s469, 0
          %s476 = sadd.s32 %s36, %s473
          %s477 = scalar_lea.hbm %s0, %s476
          %s478 = sshll.u32 %s477, 4
          %s479 = int_to_ptr.hbm [resolvable:$true] %s478
          %s480 = sshll.u32 %s472, 4
          %s481 = int_to_ptr.vmem [resolvable:$true] %s480
          %486 = dma.hbm_to_vmem [thread:$0]  %s479, 128, %s481, %s469, 16, 16, 1
        $region52: #{tpu_custom_call.1} parent=47 // pred_fallthru
          _
      $region48: #{tpu_custom_call.1} parent=5 // pred_fallthru
        _
      %p487 = scmp.le.s32.totalorder 1, %s29
      %p488 = scmp.lt.s32.totalorder %s29, 3
      %p489 = pnand %p487, %p488
      %p490 = pneg %p489
      // Predicated region
      $region53: #{tpu_custom_call.1} parent=5 // pred_check
        _
      $region54: #{tpu_custom_call.1} parent=5 // pred_check_branch
        %492 = sbr.rel (%p489) target = $region56
      $region55: #{tpu_custom_call.1} parent=5 // pred_region
        %s493 = ssub.s32 %s29, 1
        %s494 = sand.u32 %s56, 1
        %s495 = scalar_lea.sflag [#allocation6], %s494
        %s496 = sand.u32 %s56, 1
        %s497 = smul.addr %s496, 8
        %s498 = scalar_lea.vmem [#allocation5], %s497
        // Predicated region
        $region57: #{tpu_custom_call.1} parent=55 // pred_check
          %p499 = pneg %p69
        $region58: #{tpu_custom_call.1} parent=55 // pred_check_branch
          %501 = sbr.rel (%p499) target = $region60
        $region59: #{tpu_custom_call.1} parent=55 // pred_region
          %503 = dma.done %s495, 128
        $region60: #{tpu_custom_call.1} parent=55 // pred_fallthru
          _
        // Predicated region
        $region61: #{tpu_custom_call.1} parent=55 // pred_check
          %p504 = pneg %p95
        $region62: #{tpu_custom_call.1} parent=55 // pred_check_branch
          %506 = sbr.rel (%p504) target = $region64
        $region63: #{tpu_custom_call.1} parent=55 // pred_region
          %508 = dma.done [#allocation9], 32
        $region64: #{tpu_custom_call.1} parent=55 // pred_fallthru
          _
        // Predicated region
        $region65: #{tpu_custom_call.1} parent=55 // pred_check
          %p509 = pneg %p121
        $region66: #{tpu_custom_call.1} parent=55 // pred_check_branch
          %511 = sbr.rel (%p509) target = $region68
        $region67: #{tpu_custom_call.1} parent=55 // pred_region
          %513 = dma.done [#allocation9], 32
        $region68: #{tpu_custom_call.1} parent=55 // pred_fallthru
          _
        // Predicated region
        $region69: #{tpu_custom_call.1} parent=55 // pred_check
          %p514 = pneg %p142
        $region70: #{tpu_custom_call.1} parent=55 // pred_check_branch
          %516 = sbr.rel (%p514) target = $region72
        $region71: #{tpu_custom_call.1} parent=55 // pred_region
          %518 = dma.done [#allocation12], 256
        $region72: #{tpu_custom_call.1} parent=55 // pred_fallthru
          _
        // Predicated region
        $region73: #{tpu_custom_call.1} parent=55 // pred_check
          %p519 = pneg %p168
        $region74: #{tpu_custom_call.1} parent=55 // pred_check_branch
          %521 = sbr.rel (%p519) target = $region76
        $region75: #{tpu_custom_call.1} parent=55 // pred_region
          %523 = dma.done [#allocation12], 128
        $region76: #{tpu_custom_call.1} parent=55 // pred_fallthru
          _
        // Predicated region
        $region77: #{tpu_custom_call.1} parent=55 // pred_check
          %p524 = pneg %p215
        $region78: #{tpu_custom_call.1} parent=55 // pred_check_branch
          %526 = sbr.rel (%p524) target = $region80
        $region79: #{tpu_custom_call.1} parent=55 // pred_region
          %528 = dma.done [#allocation15], 256
        $region80: #{tpu_custom_call.1} parent=55 // pred_fallthru
          _
        // Predicated region
        $region81: #{tpu_custom_call.1} parent=55 // pred_check
          %p529 = pneg %p236
        $region82: #{tpu_custom_call.1} parent=55 // pred_check_branch
          %531 = sbr.rel (%p529) target = $region84
        $region83: #{tpu_custom_call.1} parent=55 // pred_region
          %533 = dma.done [#allocation15], 256
        $region84: #{tpu_custom_call.1} parent=55 // pred_fallthru
          _
        // Predicated region
        $region85: #{tpu_custom_call.1} parent=55 // pred_check
          %p534 = pneg %p257
        $region86: #{tpu_custom_call.1} parent=55 // pred_check_branch
          %536 = sbr.rel (%p534) target = $region88
        $region87: #{tpu_custom_call.1} parent=55 // pred_region
          %538 = dma.done [#allocation18], 256
        $region88: #{tpu_custom_call.1} parent=55 // pred_fallthru
          _
        %s539 = sand.u32 %s56, 1
        %s540 = scalar_lea.sflag [#allocation6], %s539
        %s541 = sand.u32 %s56, 1
        %s542 = smul.addr %s541, 8
        %s543 = scalar_lea.vmem [#allocation5], %s542
        %p544 = pneg %p69
        %p545 = pneg %p66
        %p546 = pneg %p95
        %p547 = pneg %p92
        %p548 = pneg %p121
        %p549 = pneg %p118
        %p550 = pneg %p142
        %p551 = pneg %p139
        %p552 = pneg %p168
        %p553 = pneg %p165
        %s554 = smul.u32 2, %s38
        %p555 = scmp.lt.s32.totalorder %s554, 1
        %s556 = scalar_select %p555, %s554, 1
        %s557 = scalar_lea.vmem %s5, %s556
        %p558 = pneg %p194
        %p559 = pneg %p191
        %p560 = pneg %p215
        %p561 = pneg %p212
        %p562 = pneg %p236
        %p563 = pneg %p233
        %p564 = pneg %p257
        %p565 = pneg %p254
        %p566 = pneg %p285
        %p567 = pneg %p282
        %s568 = sand.u32 %s272, 1
        %s569 = scalar_lea.sflag [#allocation7], %s568
        %s570 = sand.u32 %s272, 1
        %s571 = smul.addr %s570, 16
        %s572 = scalar_lea.vmem [#allocation19], %s571
        %p573 = pneg %p311
        %p574 = pneg %p308
        %p575 = pneg %p337
        %p576 = pneg %p334
        %s577 = smul.u32 8, %s39
        %s578 = smul.u32 2, %s38
        %s579 = smul.u32 2, %s38
        %p580 = scmp.lt.s32.totalorder %s579, 1
        %s581 = scalar_select %p580, %s579, 1
        %s582 = scalar_lea.vmem %s5, %s581
        %s583 = smul.u32 2, %s38
        %s584 = smul.u32 2, %s38
        %p586 = scmp.eq.s32.totalorder %s39, 0
        // Predicated region
        $region89: #{tpu_custom_call.1} parent=55 // pred_check
          %p587 = pneg %p586
        $region90: #{tpu_custom_call.1} parent=55 // pred_check_branch
          %589 = sbr.rel (%p587) target = $region92
        $region91: #{tpu_custom_call.1} parent=55 // pred_region
          %v590 = vld [vmem:[#allocation8] sm:$0x3]
          %vm591 = vcmask 254976
          %592 = vst.msk [vmem:[#allocation2] sm:$0x3] %vm591, %v590
          %v593 = vld [vmem:[#allocation10] sm:$0x3]
          %594 = vst.msk [vmem:[#allocation3] sm:$0x3] %vm591, %v593
        $region92: #{tpu_custom_call.1} parent=55 // pred_fallthru
          _
        %v595 = vld [vmem:[#allocation11] sm:$0xf]
        %v596 = vld [vmem:[#allocation11 + $0x4] sm:$0xf]
        %v597 = vld [vmem:[#allocation11 + $0x8] sm:$0xf]
        %v598 = vld [vmem:[#allocation11 + $0xc] sm:$0xf]
        %v599 = vld [vmem:[#allocation2] sm:$0x3]
        %v600 = vld [vmem:[#allocation3] sm:$0x3]
        %v601 = vld [vmem:[%s498] sm:$0x1]
        %v602 = vunpack.c.l.bf16 %v601
        %v603 = vpack.c.bf16 %v599, %v599
        %v608 = vunpack.c.l.b16 %v595
        %v609 = vunpack.c.l.b16 %v596
        %v610 = vunpack.c.l.b16 %v597
        %v611 = vunpack.c.l.b16 %v598
        %v612 = vpack.c.b16 %v609, %v608
        %v613 = vpack.c.b16 %v611, %v610
        %vm616 = vcmask 261120
        %v618 = vsel %vm616, %v603, 0
        %620 = vmatpush.bf16.msra.mxu0 0
        %621 = vmatpush.bf16.msra.mxu0 0
        %622 = vmatpush.bf16.msra.mxu0 0
        %623 = vmatpush.bf16.msra.mxu0 0
        %624 = vmatpush.bf16.msra.mxu0 0
        %625 = vmatpush.bf16.msra.mxu0 0
        %626 = vmatpush.bf16.msra.mxu0 %v613
        %627 = vmatpush.bf16.msra.mxu0 %v612
        %628 = vmatmul.bf16.gmra.mxu0 %v618
        %v629 = vpop.f32.mrf.mxu0
        %v630 = vadd.f32 0.0, %v629
        %v631 = vpop.f32.mrf.mxu0
        %632 = vdwg.mxu0
        %v633 = vadd.f32 %v602, %v630
        %v634 = vmul.f32 %v633, 0.5
        %v635 = vtanh.pop %v634
        %v636 = vmul.f32 %v635, 0.5
        %v637 = vadd.f32 %v636, 0.5
        %v638 = vtanh.pop %v633
        %640 = vrot.lane.b32.xlu0 %v600, 32
        %v641 = vpop.permute.xlu0 %640
        %v643 = vmul.f32 %v637, %v641
        %645 = vrot.lane.b32.xlu0 %v638, 64
        %v646 = vpop.permute.xlu0 %645
        %v648 = vmul.f32 %v637, %v646
        %650 = vrot.lane.b32.xlu0 %v648, 32
        %v651 = vpop.permute.xlu0 %650
        %v653 = vadd.f32 %v643, %v651
        %v654 = vtanh.pop %v653
        %656 = vrot.lane.b32.xlu0 %v654, 64
        %v657 = vpop.permute.xlu0 %656
        %v659 = vmul.f32 %v637, %v657
        %661 = vst [vmem:[#allocation1] ss:$4 sm:$0xff] %v659
        %v662 = vld.sshfl [vmem:[#allocation1] sm:$0xff pattern:$0x73625140]
        %663 = vrot.lane.b32.xlu0 %v662, 32
        %v664 = vpop.permute.xlu0 %663
        %vm666 = vcmask 254976
        %667 = vst.msk [vmem:[#allocation4] sm:$0x3] %vm666, %v664
        %s668 = scalar_lea.vmem %s498, 1 [#allocation5]
        %v669 = vld [vmem:[%s668] sm:$0x1]
        %v670 = vunpack.c.l.bf16 %v669
        %v671 = vpack.c.bf16 %v659, %v659
        %673 = vrot.lane.b32.xlu0 %v671, 32
        %v674 = vpop.permute.xlu0 %673
        %v676 = vsel %vm616, %v674, 0
        %678 = vmatpush.bf16.msra.mxu0 0
        %679 = vmatpush.bf16.msra.mxu0 0
        %680 = vmatpush.bf16.msra.mxu0 0
        %681 = vmatpush.bf16.msra.mxu0 0
        %682 = vmatpush.bf16.msra.mxu0 0
        %683 = vmatpush.bf16.msra.mxu0 0
        %684 = vmatpush.bf16.msra.mxu0 %v613
        %685 = vmatpush.bf16.msra.mxu0 %v612
        %686 = vmatmul.bf16.gmra.mxu0 %v676
        %v687 = vpop.f32.mrf.mxu0
        %v688 = vadd.f32 0.0, %v687
        %v689 = vpop.f32.mrf.mxu0
        %690 = vdwg.mxu0
        %v691 = vadd.f32 %v670, %v688
        %v692 = vmul.f32 %v691, 0.5
        %v693 = vtanh.pop %v692
        %v694 = vmul.f32 %v693, 0.5
        %v695 = vadd.f32 %v694, 0.5
        %v696 = vtanh.pop %v691
        %v697 = vmul.f32 %v695, %v653
        %699 = vrot.lane.b32.xlu0 %v696, 64
        %v700 = vpop.permute.xlu0 %699
        %v702 = vmul.f32 %v695, %v700
        %704 = vrot.lane.b32.xlu0 %v702, 32
        %v705 = vpop.permute.xlu0 %704
        %v707 = vadd.f32 %v697, %v705
        %v708 = vtanh.pop %v707
        %710 = vrot.lane.b32.xlu0 %v708, 64
        %v711 = vpop.permute.xlu0 %710
        %v713 = vmul.f32 %v695, %v711
        %715 = vst [vmem:[#allocation1] ss:$4 sm:$0xff] %v713
        %v716 = vld.sshfl [vmem:[#allocation1] sm:$0xff pattern:$0x73625140]
        %717 = vrot.lane.b32.xlu0 %v716, 32
        %v718 = vpop.permute.xlu0 %717
        %s720 = scalar_lea.vmem [#allocation4], 2
        %721 = vst.msk [vmem:[%s720] sm:$0x3] %vm666, %v718
        %s722 = scalar_lea.vmem %s498, 2 [#allocation5]
        %v723 = vld [vmem:[%s722] sm:$0x1]
        %v724 = vunpack.c.l.bf16 %v723
        %v725 = vpack.c.bf16 %v713, %v713
        %727 = vrot.lane.b32.xlu0 %v725, 32
        %v728 = vpop.permute.xlu0 %727
        %v730 = vsel %vm616, %v728, 0
        %732 = vmatpush.bf16.msra.mxu0 0
        %733 = vmatpush.bf16.msra.mxu0 0
        %734 = vmatpush.bf16.msra.mxu0 0
        %735 = vmatpush.bf16.msra.mxu0 0
        %736 = vmatpush.bf16.msra.mxu0 0
        %737 = vmatpush.bf16.msra.mxu0 0
        %738 = vmatpush.bf16.msra.mxu0 %v613
        %739 = vmatpush.bf16.msra.mxu0 %v612
        %740 = vmatmul.bf16.gmra.mxu0 %v730
        %v741 = vpop.f32.mrf.mxu0
        %v742 = vadd.f32 0.0, %v741
        %v743 = vpop.f32.mrf.mxu0
        %744 = vdwg.mxu0
        %v745 = vadd.f32 %v724, %v742
        %v746 = vmul.f32 %v745, 0.5
        %v747 = vtanh.pop %v746
        %v748 = vmul.f32 %v747, 0.5
        %v749 = vadd.f32 %v748, 0.5
        %v750 = vtanh.pop %v745
        %v751 = vmul.f32 %v749, %v707
        %753 = vrot.lane.b32.xlu0 %v750, 64
        %v754 = vpop.permute.xlu0 %753
        %v756 = vmul.f32 %v749, %v754
        %758 = vrot.lane.b32.xlu0 %v756, 32
        %v759 = vpop.permute.xlu0 %758
        %v761 = vadd.f32 %v751, %v759
        %v762 = vtanh.pop %v761
        %764 = vrot.lane.b32.xlu0 %v762, 64
        %v765 = vpop.permute.xlu0 %764
        %v767 = vmul.f32 %v749, %v765
        %769 = vst [vmem:[#allocation1] ss:$4 sm:$0xff] %v767
        %v770 = vld.sshfl [vmem:[#allocation1] sm:$0xff pattern:$0x73625140]
        %771 = vrot.lane.b32.xlu0 %v770, 32
        %v772 = vpop.permute.xlu0 %771
        %s774 = scalar_lea.vmem [#allocation4], 4
        %775 = vst.msk [vmem:[%s774] sm:$0x3] %vm666, %v772
        %s776 = scalar_lea.vmem %s498, 3 [#allocation5]
        %v777 = vld [vmem:[%s776] sm:$0x1]
        %v778 = vunpack.c.l.bf16 %v777
        %v779 = vpack.c.bf16 %v767, %v767
        %781 = vrot.lane.b32.xlu0 %v779, 32
        %v782 = vpop.permute.xlu0 %781
        %v784 = vsel %vm616, %v782, 0
        %786 = vmatpush.bf16.msra.mxu0 0
        %787 = vmatpush.bf16.msra.mxu0 0
        %788 = vmatpush.bf16.msra.mxu0 0
        %789 = vmatpush.bf16.msra.mxu0 0
        %790 = vmatpush.bf16.msra.mxu0 0
        %791 = vmatpush.bf16.msra.mxu0 0
        %792 = vmatpush.bf16.msra.mxu0 %v613
        %793 = vmatpush.bf16.msra.mxu0 %v612
        %794 = vmatmul.bf16.gmra.mxu0 %v784
        %v795 = vpop.f32.mrf.mxu0
        %v796 = vadd.f32 0.0, %v795
        %v797 = vpop.f32.mrf.mxu0
        %798 = vdwg.mxu0
        %v799 = vadd.f32 %v778, %v796
        %v800 = vmul.f32 %v799, 0.5
        %v801 = vtanh.pop %v800
        %v802 = vmul.f32 %v801, 0.5
        %v803 = vadd.f32 %v802, 0.5
        %v804 = vtanh.pop %v799
        %v805 = vmul.f32 %v803, %v761
        %807 = vrot.lane.b32.xlu0 %v804, 64
        %v808 = vpop.permute.xlu0 %807
        %v810 = vmul.f32 %v803, %v808
        %812 = vrot.lane.b32.xlu0 %v810, 32
        %v813 = vpop.permute.xlu0 %812
        %v815 = vadd.f32 %v805, %v813
        %v816 = vtanh.pop %v815
        %818 = vrot.lane.b32.xlu0 %v816, 64
        %v819 = vpop.permute.xlu0 %818
        %v821 = vmul.f32 %v803, %v819
        %823 = vst [vmem:[#allocation1] ss:$4 sm:$0xff] %v821
        %v824 = vld.sshfl [vmem:[#allocation1] sm:$0xff pattern:$0x73625140]
        %825 = vrot.lane.b32.xlu0 %v824, 32
        %v826 = vpop.permute.xlu0 %825
        %s828 = scalar_lea.vmem [#allocation4], 6
        %829 = vst.msk [vmem:[%s828] sm:$0x3] %vm666, %v826
        %s830 = scalar_lea.vmem %s498, 4 [#allocation5]
        %v831 = vld [vmem:[%s830] sm:$0x1]
        %v832 = vunpack.c.l.bf16 %v831
        %v833 = vpack.c.bf16 %v821, %v821
        %835 = vrot.lane.b32.xlu0 %v833, 32
        %v836 = vpop.permute.xlu0 %835
        %v838 = vsel %vm616, %v836, 0
        %840 = vmatpush.bf16.msra.mxu0 0
        %841 = vmatpush.bf16.msra.mxu0 0
        %842 = vmatpush.bf16.msra.mxu0 0
        %843 = vmatpush.bf16.msra.mxu0 0
        %844 = vmatpush.bf16.msra.mxu0 0
        %845 = vmatpush.bf16.msra.mxu0 0
        %846 = vmatpush.bf16.msra.mxu0 %v613
        %847 = vmatpush.bf16.msra.mxu0 %v612
        %848 = vmatmul.bf16.gmra.mxu0 %v838
        %v849 = vpop.f32.mrf.mxu0
        %v850 = vadd.f32 0.0, %v849
        %v851 = vpop.f32.mrf.mxu0
        %852 = vdwg.mxu0
        %v853 = vadd.f32 %v832, %v850
        %v854 = vmul.f32 %v853, 0.5
        %v855 = vtanh.pop %v854
        %v856 = vmul.f32 %v855, 0.5
        %v857 = vadd.f32 %v856, 0.5
        %v858 = vtanh.pop %v853
        %v859 = vmul.f32 %v857, %v815
        %861 = vrot.lane.b32.xlu0 %v858, 64
        %v862 = vpop.permute.xlu0 %861
        %v864 = vmul.f32 %v857, %v862
        %866 = vrot.lane.b32.xlu0 %v864, 32
        %v867 = vpop.permute.xlu0 %866
        %v869 = vadd.f32 %v859, %v867
        %v870 = vtanh.pop %v869
        %872 = vrot.lane.b32.xlu0 %v870, 64
        %v873 = vpop.permute.xlu0 %872
        %v875 = vmul.f32 %v857, %v873
        %877 = vst [vmem:[#allocation1] ss:$4 sm:$0xff] %v875
        %v878 = vld.sshfl [vmem:[#allocation1] sm:$0xff pattern:$0x73625140]
        %879 = vrot.lane.b32.xlu0 %v878, 32
        %v880 = vpop.permute.xlu0 %879
        %s882 = scalar_lea.vmem [#allocation4], 8
        %883 = vst.msk [vmem:[%s882] sm:$0x3] %vm666, %v880
        %s884 = scalar_lea.vmem %s498, 5 [#allocation5]
        %v885 = vld [vmem:[%s884] sm:$0x1]
        %v886 = vunpack.c.l.bf16 %v885
        %v887 = vpack.c.bf16 %v875, %v875
        %889 = vrot.lane.b32.xlu0 %v887, 32
        %v890 = vpop.permute.xlu0 %889
        %v892 = vsel %vm616, %v890, 0
        %894 = vmatpush.bf16.msra.mxu0 0
        %895 = vmatpush.bf16.msra.mxu0 0
        %896 = vmatpush.bf16.msra.mxu0 0
        %897 = vmatpush.bf16.msra.mxu0 0
        %898 = vmatpush.bf16.msra.mxu0 0
        %899 = vmatpush.bf16.msra.mxu0 0
        %900 = vmatpush.bf16.msra.mxu0 %v613
        %901 = vmatpush.bf16.msra.mxu0 %v612
        %902 = vmatmul.bf16.gmra.mxu0 %v892
        %v903 = vpop.f32.mrf.mxu0
        %v904 = vadd.f32 0.0, %v903
        %v905 = vpop.f32.mrf.mxu0
        %906 = vdwg.mxu0
        %v907 = vadd.f32 %v886, %v904
        %v908 = vmul.f32 %v907, 0.5
        %v909 = vtanh.pop %v908
        %v910 = vmul.f32 %v909, 0.5
        %v911 = vadd.f32 %v910, 0.5
        %v912 = vtanh.pop %v907
        %v913 = vmul.f32 %v911, %v869
        %915 = vrot.lane.b32.xlu0 %v912, 64
        %v916 = vpop.permute.xlu0 %915
        %v918 = vmul.f32 %v911, %v916
        %920 = vrot.lane.b32.xlu0 %v918, 32
        %v921 = vpop.permute.xlu0 %920
        %v923 = vadd.f32 %v913, %v921
        %v924 = vtanh.pop %v923
        %926 = vrot.lane.b32.xlu0 %v924, 64
        %v927 = vpop.permute.xlu0 %926
        %v929 = vmul.f32 %v911, %v927
        %931 = vst [vmem:[#allocation1] ss:$4 sm:$0xff] %v929
        %v932 = vld.sshfl [vmem:[#allocation1] sm:$0xff pattern:$0x73625140]
        %933 = vrot.lane.b32.xlu0 %v932, 32
        %v934 = vpop.permute.xlu0 %933
        %s936 = scalar_lea.vmem [#allocation4], 10
        %937 = vst.msk [vmem:[%s936] sm:$0x3] %vm666, %v934
        %s938 = scalar_lea.vmem %s498, 6 [#allocation5]
        %v939 = vld [vmem:[%s938] sm:$0x1]
        %v940 = vunpack.c.l.bf16 %v939
        %v941 = vpack.c.bf16 %v929, %v929
        %943 = vrot.lane.b32.xlu0 %v941, 32
        %v944 = vpop.permute.xlu0 %943
        %v946 = vsel %vm616, %v944, 0
        %948 = vmatpush.bf16.msra.mxu0 0
        %949 = vmatpush.bf16.msra.mxu0 0
        %950 = vmatpush.bf16.msra.mxu0 0
        %951 = vmatpush.bf16.msra.mxu0 0
        %952 = vmatpush.bf16.msra.mxu0 0
        %953 = vmatpush.bf16.msra.mxu0 0
        %954 = vmatpush.bf16.msra.mxu0 %v613
        %955 = vmatpush.bf16.msra.mxu0 %v612
        %956 = vmatmul.bf16.gmra.mxu0 %v946
        %v957 = vpop.f32.mrf.mxu0
        %v958 = vadd.f32 0.0, %v957
        %v959 = vpop.f32.mrf.mxu0
        %960 = vdwg.mxu0
        %v961 = vadd.f32 %v940, %v958
        %v962 = vmul.f32 %v961, 0.5
        %v963 = vtanh.pop %v962
        %v964 = vmul.f32 %v963, 0.5
        %v965 = vadd.f32 %v964, 0.5
        %v966 = vtanh.pop %v961
        %v967 = vmul.f32 %v965, %v923
        %969 = vrot.lane.b32.xlu0 %v966, 64
        %v970 = vpop.permute.xlu0 %969
        %v972 = vmul.f32 %v965, %v970
        %974 = vrot.lane.b32.xlu0 %v972, 32
        %v975 = vpop.permute.xlu0 %974
        %v977 = vadd.f32 %v967, %v975
        %v978 = vtanh.pop %v977
        %980 = vrot.lane.b32.xlu0 %v978, 64
        %v981 = vpop.permute.xlu0 %980
        %v983 = vmul.f32 %v965, %v981
        %985 = vst [vmem:[#allocation1] ss:$4 sm:$0xff] %v983
        %v986 = vld.sshfl [vmem:[#allocation1] sm:$0xff pattern:$0x73625140]
        %987 = vrot.lane.b32.xlu0 %v986, 32
        %v988 = vpop.permute.xlu0 %987
        %s990 = scalar_lea.vmem [#allocation4], 12
        %991 = vst.msk [vmem:[%s990] sm:$0x3] %vm666, %v988
        %s992 = scalar_lea.vmem %s498, 7 [#allocation5]
        %v993 = vld [vmem:[%s992] sm:$0x1]
        %v994 = vunpack.c.l.bf16 %v993
        %v995 = vpack.c.bf16 %v983, %v983
        %997 = vrot.lane.b32.xlu0 %v995, 32
        %v998 = vpop.permute.xlu0 %997
        %v1000 = vsel %vm616, %v998, 0
        %1002 = vmatpush.bf16.msra.mxu0 0
        %1003 = vmatpush.bf16.msra.mxu0 0
        %1004 = vmatpush.bf16.msra.mxu0 0
        %1005 = vmatpush.bf16.msra.mxu0 0
        %1006 = vmatpush.bf16.msra.mxu0 0
        %1007 = vmatpush.bf16.msra.mxu0 0
        %1008 = vmatpush.bf16.msra.mxu0 %v613
        %1009 = vmatpush.bf16.msra.mxu0 %v612
        %1010 = vmatmul.bf16.gmra.mxu0 %v1000
        %v1011 = vpop.f32.mrf.mxu0
        %v1012 = vadd.f32 0.0, %v1011
        %v1013 = vpop.f32.mrf.mxu0
        %1014 = vdwg.mxu0
        %v1015 = vadd.f32 %v994, %v1012
        %v1016 = vmul.f32 %v1015, 0.5
        %v1017 = vtanh.pop %v1016
        %v1018 = vmul.f32 %v1017, 0.5
        %v1019 = vadd.f32 %v1018, 0.5
        %v1020 = vtanh.pop %v1015
        %v1021 = vmul.f32 %v1019, %v977
        %1023 = vrot.lane.b32.xlu0 %v1020, 64
        %v1024 = vpop.permute.xlu0 %1023
        %v1026 = vmul.f32 %v1019, %v1024
        %1028 = vrot.lane.b32.xlu0 %v1026, 32
        %v1029 = vpop.permute.xlu0 %1028
        %v1031 = vadd.f32 %v1021, %v1029
        %v1032 = vtanh.pop %v1031
        %1034 = vrot.lane.b32.xlu0 %v1032, 64
        %v1035 = vpop.permute.xlu0 %1034
        %v1037 = vmul.f32 %v1019, %v1035
        %1039 = vst [vmem:[#allocation1] ss:$4 sm:$0xff] %v1037
        %v1040 = vld.sshfl [vmem:[#allocation1] sm:$0xff pattern:$0x73625140]
        %1041 = vrot.lane.b32.xlu0 %v1040, 32
        %v1042 = vpop.permute.xlu0 %1041
        %s1044 = scalar_lea.vmem [#allocation4], 14
        %1045 = vst.msk [vmem:[%s1044] sm:$0x3] %vm666, %v1042
        %1046 = vst [vmem:[#allocation1] ss:$4 sm:$0xff] %v1037
        %v1047 = vld.sshfl [vmem:[#allocation1] sm:$0xff pattern:$0x73625140]
        %1048 = vrot.lane.b32.xlu0 %v1047, 32
        %v1049 = vpop.permute.xlu0 %1048
        %1051 = vst.msk [vmem:[#allocation2] sm:$0x3] %vm666, %v1049
        %1053 = vst [vmem:[#allocation1] ss:$4 sm:$0xff] %v1031
        %v1054 = vld.sshfl [vmem:[#allocation1] sm:$0xff pattern:$0x73625140]
        %1055 = vrot.lane.b32.xlu0 %v1054, 96
        %v1056 = vpop.permute.xlu0 %1055
        %1058 = vst.msk [vmem:[#allocation3] sm:$0x3] %vm666, %v1056
        %p1059 = scmp.eq.s32.totalorder %s39, 1
        // Predicated region
        $region93: #{tpu_custom_call.1} parent=55 // pred_check
          %p1060 = pneg %p1059
        $region94: #{tpu_custom_call.1} parent=55 // pred_check_branch
          %1062 = sbr.rel (%p1060) target = $region96
        $region95: #{tpu_custom_call.1} parent=55 // pred_region
          %1063 = vst [vmem:[#allocation1] ss:$4 sm:$0xff] %v1037
          %v1064 = vld.sshfl [vmem:[#allocation1] sm:$0xff pattern:$0x73625140]
          %1065 = vrot.lane.b32.xlu0 %v1064, 32
          %v1066 = vpop.permute.xlu0 %1065
          %1068 = vst.msk [vmem:[#allocation20] sm:$0x3] %vm666, %v1066
          %1069 = vst [vmem:[#allocation1] ss:$4 sm:$0xff] %v1031
          %v1070 = vld.sshfl [vmem:[#allocation1] sm:$0xff pattern:$0x73625140]
          %1071 = vrot.lane.b32.xlu0 %v1070, 96
          %v1072 = vpop.permute.xlu0 %1071
          %1074 = vst.msk [vmem:[#allocation22] sm:$0x3] %vm666, %v1072
        $region96: #{tpu_custom_call.1} parent=55 // pred_fallthru
          _
        %v1075 = vld [vmem:[#allocation4] sm:$0x3]
        %v1076 = vld [vmem:[#allocation4 + $0x2] sm:$0x3]
        %v1077 = vld [vmem:[#allocation4 + $0x4] sm:$0x3]
        %v1078 = vld [vmem:[#allocation4 + $0x6] sm:$0x3]
        %v1079 = vld [vmem:[#allocation4 + $0x8] sm:$0x3]
        %v1080 = vld [vmem:[#allocation4 + $0xa] sm:$0x3]
        %v1081 = vld [vmem:[#allocation4 + $0xc] sm:$0x3]
        %v1082 = vld [vmem:[#allocation4 + $0xe] sm:$0x3]
        %v1083 = vpack.c.bf16 %v1075, %v1075
        %v1084 = vpack.c.bf16 %v1076, %v1076
        %v1085 = vpack.c.bf16 %v1077, %v1077
        %v1086 = vpack.c.bf16 %v1078, %v1078
        %v1087 = vpack.c.bf16 %v1079, %v1079
        %v1088 = vpack.c.bf16 %v1080, %v1080
        %v1089 = vpack.c.bf16 %v1081, %v1081
        %v1090 = vpack.c.bf16 %v1082, %v1082
        %v1091 = vld [vmem:[#allocation13] sm:$0xf]
        %v1092 = vld [vmem:[#allocation13 + $0x4] sm:$0xf]
        %v1093 = vld [vmem:[%s582] sm:$0x1]
        %v1094 = vld [vmem:[%s582 + $0x1] sm:$0x1]
        %v1095 = vld [vmem:[#allocation14] sm:$0xf]
        %v1096 = vld [vmem:[#allocation14 + $0x4] sm:$0xf]
        %v1097 = vld [vmem:[#allocation14 + $0x8] sm:$0xf]
        %v1098 = vld [vmem:[#allocation14 + $0xc] sm:$0xf]
        %1100 = vst [vmem:[#allocation1] ss:$9 sm:$0xff] %v1083
        %s1102 = scalar_lea.vmem [#allocation1], 1
        %1103 = vst [vmem:[%s1102] ss:$9 sm:$0xff] %v1084
        %s1105 = scalar_lea.vmem [#allocation1], 2
        %1106 = vst [vmem:[%s1105] ss:$9 sm:$0xff] %v1085
        %s1108 = scalar_lea.vmem [#allocation1], 3
        %1109 = vst [vmem:[%s1108] ss:$9 sm:$0xff] %v1086
        %s1111 = scalar_lea.vmem [#allocation1], 4
        %1112 = vst [vmem:[%s1111] ss:$9 sm:$0xff] %v1087
        %s1114 = scalar_lea.vmem [#allocation1], 5
        %1115 = vst [vmem:[%s1114] ss:$9 sm:$0xff] %v1088
        %s1117 = scalar_lea.vmem [#allocation1], 6
        %1118 = vst [vmem:[%s1117] ss:$9 sm:$0xff] %v1089
        %s1120 = scalar_lea.vmem [#allocation1], 7
        %1121 = vst [vmem:[%s1120] ss:$9 sm:$0xff] %v1090
        %v1122 = vld [vmem:[#allocation1] sm:$0xff]
        %v1127 = vunpack.c.l.b16 %v1095
        %v1128 = vunpack.c.l.b16 %v1096
        %v1129 = vunpack.c.l.b16 %v1097
        %v1130 = vunpack.c.l.b16 %v1098
        %v1131 = vpack.c.b16 %v1128, %v1127
        %v1132 = vpack.c.b16 %v1130, %v1129
        %v1135 = vsel %vm616, %v1122, 0
        %1137 = vmatpush.bf16.msra.mxu0 0
        %1138 = vmatpush.bf16.msra.mxu0 0
        %1139 = vmatpush.bf16.msra.mxu0 0
        %1140 = vmatpush.bf16.msra.mxu0 0
        %1141 = vmatpush.bf16.msra.mxu0 0
        %1142 = vmatpush.bf16.msra.mxu0 0
        %1143 = vmatpush.bf16.msra.mxu0 %v1132
        %1144 = vmatpush.bf16.msra.mxu0 %v1131
        %1145 = vmatmul.bf16.gmra.mxu0 %v1135
        %v1146 = vpop.f32.mrf.mxu0
        %v1147 = vadd.f32 0.0, %v1146
        %v1148 = vpop.f32.mrf.mxu0
        %v1149 = vadd.f32 0.0, %v1148
        %1150 = vdwg.mxu0
        %v1153 = vrot.slane %v1147, 2
        %v1154 = vrot.slane %v1147, 4
        %v1155 = vrot.slane %v1147, 6
        %v1156 = vrot.slane %v1149, 2
        %v1157 = vrot.slane %v1149, 4
        %v1158 = vrot.slane %v1149, 6
        %v1165 = vpack.c.bf16 %v1147, %v1147
        %v1166 = vpack.c.bf16 %v1153, %v1153
        %v1167 = vpack.c.bf16 %v1154, %v1154
        %v1168 = vpack.c.bf16 %v1155, %v1155
        %v1169 = vpack.c.bf16 %v1149, %v1149
        %v1170 = vpack.c.bf16 %v1156, %v1156
        %v1171 = vpack.c.bf16 %v1157, %v1157
        %v1172 = vpack.c.bf16 %v1158, %v1158
        %v1175 = vperm.slane %v1093, 0
        %v1176 = vperm.slane %v1094, 0
        %v1179 = vrot.slane %v1169, 4
        %vm1180 = vcmask 1047556
        %v1181 = vsel %vm1180, %v1179, %v1165
        %v1183 = vunpack.c.l.s4 1983009808
        %v1184 = vunpack.c.0.s8 %v1183
        %v1185 = vperm.slane %v1181, %v1184
        %v1186 = vrot.slane %v1171, 4
        %v1187 = vsel %vm1180, %v1186, %v1167
        %v1189 = vunpack.c.l.s4 1983009808
        %v1190 = vunpack.c.0.s8 %v1189
        %v1191 = vperm.slane %v1187, %v1190
        %v1192 = vrot.slane %v1191, 4
        %v1193 = vsel %vm1180, %v1192, %v1185
        %v1195 = vunpack.c.l.s4 1934713408
        %v1196 = vunpack.c.0.s8 %v1195
        %v1197 = vperm.slane %v1193, %v1196
        %v1198 = vrot.slane %v1170, 4
        %v1199 = vsel %vm1180, %v1198, %v1166
        %v1201 = vunpack.c.l.s4 1983009808
        %v1202 = vunpack.c.0.s8 %v1201
        %v1203 = vperm.slane %v1199, %v1202
        %v1204 = vrot.slane %v1172, 4
        %v1205 = vsel %vm1180, %v1204, %v1168
        %v1207 = vunpack.c.l.s4 1983009808
        %v1208 = vunpack.c.0.s8 %v1207
        %v1209 = vperm.slane %v1205, %v1208
        %v1210 = vrot.slane %v1209, 4
        %v1211 = vsel %vm1180, %v1210, %v1203
        %v1213 = vunpack.c.l.s4 1934713408
        %v1214 = vunpack.c.0.s8 %v1213
        %v1215 = vperm.slane %v1211, %v1214
        %v1218 = vpack.i.b16 %v1215, %v1197
        %v1219 = vshrl.u32 %v1197, 16
        %v1220 = vshrl.u32 %v1215, 16
        %v1221 = vpack.i.b16 %v1220, %v1219
        %v1223 = vsel %vm616, %v1218, 0
        %v1226 = vsel %vm616, %v1091, 0
        %1228 = vmatpush.bf16.xpose.msra.mxu0 0
        %1229 = vmatpush.bf16.xpose.msra.mxu0 0
        %1230 = vmatpush.bf16.xpose.msra.mxu0 0
        %1231 = vmatpush.bf16.xpose.msra.mxu0 0
        %1232 = vmatpush.bf16.xpose.msra.mxu0 0
        %1233 = vmatpush.bf16.xpose.msra.mxu0 0
        %1234 = vmatpush.bf16.xpose.msra.mxu0 0
        %1235 = vmatpush.bf16.xpose.msra.mxu0 %v1226
        %1236 = vmatmul.bf16.gmra.mxu0 %v1223
        %v1237 = vpop.f32.mrf.mxu0
        %v1238 = vadd.f32 %v1175, %v1237
        %v1239 = vpop.f32.mrf.mxu0
        %1240 = vdwg.mxu0
        %v1242 = vsel %vm616, %v1221, 0
        %v1245 = vsel %vm616, %v1092, 0
        %1247 = vmatpush.bf16.xpose.msra.mxu0 0
        %1248 = vmatpush.bf16.xpose.msra.mxu0 0
        %1249 = vmatpush.bf16.xpose.msra.mxu0 0
        %1250 = vmatpush.bf16.xpose.msra.mxu0 0
        %1251 = vmatpush.bf16.xpose.msra.mxu0 0
        %1252 = vmatpush.bf16.xpose.msra.mxu0 0
        %1253 = vmatpush.bf16.xpose.msra.mxu0 0
        %1254 = vmatpush.bf16.xpose.msra.mxu0 %v1245
        %1255 = vmatmul.bf16.gmra.mxu0 %v1242
        %v1256 = vpop.f32.mrf.mxu0
        %v1257 = vadd.f32 %v1176, %v1256
        %v1258 = vpop.f32.mrf.mxu0
        %1259 = vdwg.mxu0
        %vm1260 = vcmask 64512
        %v1261 = vsel %vm1260, %v1238, -inf
        %1262 = vmax.xlane.f32.xlu0 %v1261
        %v1263 = vpop.xlane.xlu0 %1262
        %v1264 = vsel %vm1260, %v1257, -inf
        %1265 = vmax.xlane.f32.xlu0 %v1264
        %v1266 = vpop.xlane.xlu0 %1265
        %v1267 = vsub.f32 %v1238, %v1263
        %v1268 = vsub.f32 %v1257, %v1266
        %v1269 = vmul.f32 %v1267, 1.442695
        %v1270 = vpow.pop %v1269
        %v1271 = vmul.f32 %v1268, 1.442695
        %v1272 = vpow.pop %v1271
        %v1273 = vsel %vm1260, %v1270, 0.0
        %1274 = vadd.xlane.f32.xlu0 %v1273
        %v1275 = vpop.xlane.xlu0 %1274
        %v1276 = vsel %vm1260, %v1272, 0.0
        %1277 = vadd.xlane.f32.xlu0 %v1276
        %v1278 = vpop.xlane.xlu0 %1277
        %v1279 = vrcp.pop %v1275
        %v1280 = vrcp.pop %v1278
        %v1281 = vmul.f32 %v1270, %v1279
        %v1282 = vmul.f32 %v1272, %v1280
        %v1283 = vpack.c.bf16 %v1281, %v1281
        %v1284 = vpack.c.bf16 %v1282, %v1282
        %v1286 = vsel %vm1260, %v1283, 0
        %vm1288 = vcmask 1043456
        %v1289 = vsel %vm1288, %v1091, 0
        %1291 = vmatpush.bf16.msra.mxu0 0
        %1292 = vmatpush.bf16.msra.mxu0 0
        %1293 = vmatpush.bf16.msra.mxu0 0
        %1294 = vmatpush.bf16.msra.mxu0 0
        %1295 = vmatpush.bf16.msra.mxu0 0
        %1296 = vmatpush.bf16.msra.mxu0 0
        %1297 = vmatpush.bf16.msra.mxu0 0
        %1298 = vmatpush.bf16.msra.mxu0 %v1289
        %1299 = vmatmul.bf16.gmra.mxu0 %v1286
        %v1300 = vpop.f32.mrf.mxu0
        %v1301 = vadd.f32 0.0, %v1300
        %v1302 = vpop.f32.mrf.mxu0
        %1303 = vdwg.mxu0
        %v1305 = vsel %vm1260, %v1284, 0
        %v1307 = vsel %vm1288, %v1092, 0
        %1309 = vmatpush.bf16.msra.mxu0 0
        %1310 = vmatpush.bf16.msra.mxu0 0
        %1311 = vmatpush.bf16.msra.mxu0 0
        %1312 = vmatpush.bf16.msra.mxu0 0
        %1313 = vmatpush.bf16.msra.mxu0 0
        %1314 = vmatpush.bf16.msra.mxu0 0
        %1315 = vmatpush.bf16.msra.mxu0 0
        %1316 = vmatpush.bf16.msra.mxu0 %v1307
        %1317 = vmatmul.bf16.gmra.mxu0 %v1305
        %v1318 = vpop.f32.mrf.mxu0
        %v1319 = vadd.f32 0.0, %v1318
        %v1320 = vpop.f32.mrf.mxu0
        %1321 = vdwg.mxu0
        %v1322 = vrot.slane %v1087, 4
        %v1323 = vsel %vm1180, %v1322, %v1083
        %v1325 = vunpack.c.l.s4 1983009808
        %v1326 = vunpack.c.0.s8 %v1325
        %v1327 = vperm.slane %v1323, %v1326
        %v1328 = vrot.slane %v1089, 4
        %v1329 = vsel %vm1180, %v1328, %v1085
        %v1331 = vunpack.c.l.s4 1983009808
        %v1332 = vunpack.c.0.s8 %v1331
        %v1333 = vperm.slane %v1329, %v1332
        %v1334 = vrot.slane %v1333, 4
        %v1335 = vsel %vm1180, %v1334, %v1327
        %v1337 = vunpack.c.l.s4 1934713408
        %v1338 = vunpack.c.0.s8 %v1337
        %v1339 = vperm.slane %v1335, %v1338
        %v1340 = vrot.slane %v1088, 4
        %v1341 = vsel %vm1180, %v1340, %v1084
        %v1343 = vunpack.c.l.s4 1983009808
        %v1344 = vunpack.c.0.s8 %v1343
        %v1345 = vperm.slane %v1341, %v1344
        %v1346 = vrot.slane %v1090, 4
        %v1347 = vsel %vm1180, %v1346, %v1086
        %v1349 = vunpack.c.l.s4 1983009808
        %v1350 = vunpack.c.0.s8 %v1349
        %v1351 = vperm.slane %v1347, %v1350
        %v1352 = vrot.slane %v1351, 4
        %v1353 = vsel %vm1180, %v1352, %v1345
        %v1355 = vunpack.c.l.s4 1934713408
        %v1356 = vunpack.c.0.s8 %v1355
        %v1357 = vperm.slane %v1353, %v1356
        %v1360 = vpack.i.b16 %v1357, %v1339
        %v1361 = vshrl.u32 %v1339, 16
        %v1362 = vshrl.u32 %v1357, 16
        %v1363 = vpack.i.b16 %v1362, %v1361
        %v1364 = vpack.c.bf16 %v1301, %v1301
        %v1365 = vpack.c.bf16 %v1319, %v1319
        %v1366 = vld [vmem:[#allocation16] sm:$0xf]
        %v1367 = vld [vmem:[#allocation16 + $0x4] sm:$0xf]
        %v1368 = vld [vmem:[#allocation16 + $0x8] sm:$0xf]
        %v1369 = vld [vmem:[#allocation16 + $0xc] sm:$0xf]
        %v1370 = vld [vmem:[#allocation17] sm:$0xf]
        %v1371 = vld [vmem:[#allocation17 + $0x4] sm:$0xf]
        %v1372 = vld [vmem:[#allocation17 + $0x8] sm:$0xf]
        %v1373 = vld [vmem:[#allocation17 + $0xc] sm:$0xf]
        %v1374 = vunpack.c.l.b16 %v1360
        %v1375 = vunpack.c.l.b16 %v1363
        %v1376 = vpack.c.b16 %v1375, %v1374
        %v1381 = vunpack.c.l.b16 %v1370
        %v1382 = vunpack.c.l.b16 %v1371
        %v1383 = vunpack.c.l.b16 %v1372
        %v1384 = vunpack.c.l.b16 %v1373
        %v1385 = vpack.c.b16 %v1382, %v1381
        %v1386 = vpack.c.b16 %v1384, %v1383
        %v1390 = vsel %vm616, %v1376, 0
        %1392 = vmatpush.bf16.msra.mxu0 0
        %1393 = vmatpush.bf16.msra.mxu0 0
        %1394 = vmatpush.bf16.msra.mxu0 0
        %1395 = vmatpush.bf16.msra.mxu0 0
        %1396 = vmatpush.bf16.msra.mxu0 0
        %1397 = vmatpush.bf16.msra.mxu0 0
        %1398 = vmatpush.bf16.msra.mxu0 %v1386
        %1399 = vmatpush.bf16.msra.mxu0 %v1385
        %1400 = vmatmul.bf16.gmra.mxu0 %v1390
        %v1401 = vpop.f32.mrf.mxu0
        %v1402 = vadd.f32 0.0, %v1401
        %v1403 = vpop.f32.mrf.mxu0
        %v1404 = vadd.f32 0.0, %v1403
        %1405 = vdwg.mxu0
        %v1408 = vunpack.c.l.b16 %v1364
        %v1409 = vunpack.c.l.b16 %v1365
        %v1410 = vpack.c.b16 %v1409, %v1408
        %v1415 = vunpack.c.l.b16 %v1366
        %v1416 = vunpack.c.l.b16 %v1367
        %v1417 = vunpack.c.l.b16 %v1368
        %v1418 = vunpack.c.l.b16 %v1369
        %v1419 = vpack.c.b16 %v1416, %v1415
        %v1420 = vpack.c.b16 %v1418, %v1417
        %v1424 = vsel %vm616, %v1410, 0
        %1426 = vmatpush.bf16.msra.mxu0 0
        %1427 = vmatpush.bf16.msra.mxu0 0
        %1428 = vmatpush.bf16.msra.mxu0 0
        %1429 = vmatpush.bf16.msra.mxu0 0
        %1430 = vmatpush.bf16.msra.mxu0 0
        %1431 = vmatpush.bf16.msra.mxu0 0
        %1432 = vmatpush.bf16.msra.mxu0 %v1420
        %1433 = vmatpush.bf16.msra.mxu0 %v1419
        %1434 = vmatmul.bf16.gmra.mxu0 %v1424
        %v1435 = vpop.f32.mrf.mxu0
        %v1436 = vadd.f32 %v1402, %v1435
        %v1437 = vpop.f32.mrf.mxu0
        %v1438 = vadd.f32 %v1404, %v1437
        %1439 = vdwg.mxu0
        %v1440 = vtanh.pop %v1436
        %v1441 = vtanh.pop %v1438
        %1442 = vst.msk [vmem:[%s572] sm:$0xff] %vm616, %v1440
        %1443 = vst.msk [vmem:[%s572 + $0x8] sm:$0xff] %vm616, %v1441
        %s1444 = sand.u32 %s272, 1
        %s1445 = scalar_lea.sflag [#allocation7], %s1444
        %s1446 = sand.u32 %s272, 1
        %s1447 = smul.addr %s1446, 16
        %s1448 = scalar_lea.vmem [#allocation19], %s1447
        // Predicated region
        $region97: #{tpu_custom_call.1} parent=55 // pred_check
          %p1449 = pneg %p282
        $region98: #{tpu_custom_call.1} parent=55 // pred_check_branch
          %1451 = sbr.rel (%p1449) target = $region100
        $region99: #{tpu_custom_call.1} parent=55 // pred_region
          %s1452 = smul.u32 2, %s38
          %1454 = vsyncadd %s1445, 0
          %s1455 = smul.addr %s1452, 2
          %s1456 = sadd.s32 %s39, %s1455
          %s1457 = smul.addr %s1456, 8
          %s1458 = scalar_lea.hbm %s9, %s1457
          %s1459 = sshll.u32 %s1448, 4
          %s1460 = int_to_ptr.vmem [resolvable:$true] %s1459
          %s1461 = sshll.u32 %s1458, 4
          %s1462 = int_to_ptr.hbm [resolvable:$true] %s1461
          %1467 = dma.vmem_to_hbm [thread:$0]  %s1460, 256, %s1462, %s1445, 128, 256, 8
        $region100: #{tpu_custom_call.1} parent=55 // pred_fallthru
          _
        // Predicated region
        $region101: #{tpu_custom_call.1} parent=55 // pred_check
          %p1468 = pneg %p308
        $region102: #{tpu_custom_call.1} parent=55 // pred_check_branch
          %1470 = sbr.rel (%p1468) target = $region104
        $region103: #{tpu_custom_call.1} parent=55 // pred_region
          %1472 = vsyncadd [#allocation21], 0
          %s1473 = smul.addr %s38, 2
          %s1474 = scalar_lea.hbm %s10, %s1473
          %s1476 = sshll.u32 [#allocation20], 4
          %s1477 = int_to_ptr.vmem [resolvable:$true] %s1476
          %s1478 = sshll.u32 %s1474, 4
          %s1479 = int_to_ptr.hbm [resolvable:$true] %s1478
          %1481 = dma.vmem_to_hbm [thread:$0]  %s1477, 32, %s1479, [#allocation21]
        $region104: #{tpu_custom_call.1} parent=55 // pred_fallthru
          _
        // Predicated region
        $region105: #{tpu_custom_call.1} parent=55 // pred_check
          %p1482 = pneg %p334
        $region106: #{tpu_custom_call.1} parent=55 // pred_check_branch
          %1484 = sbr.rel (%p1482) target = $region108
        $region107: #{tpu_custom_call.1} parent=55 // pred_region
          %1486 = vsyncadd [#allocation21], 0
          %s1487 = smul.addr %s38, 2
          %s1488 = scalar_lea.hbm %s11, %s1487
          %s1490 = sshll.u32 [#allocation22], 4
          %s1491 = int_to_ptr.vmem [resolvable:$true] %s1490
          %s1492 = sshll.u32 %s1488, 4
          %s1493 = int_to_ptr.hbm [resolvable:$true] %s1492
          %1495 = dma.vmem_to_hbm [thread:$0]  %s1491, 32, %s1493, [#allocation21]
        $region108: #{tpu_custom_call.1} parent=55 // pred_fallthru
          _
        // Predicated region
        $region109: #{tpu_custom_call.1} parent=55 // pred_check
          %p1496 = pneg %p308
        $region110: #{tpu_custom_call.1} parent=55 // pred_check_branch
          %1498 = sbr.rel (%p1496) target = $region112
        $region111: #{tpu_custom_call.1} parent=55 // pred_region
          %1500 = dma.done [#allocation21], 32
        $region112: #{tpu_custom_call.1} parent=55 // pred_fallthru
          _
        // Predicated region
        $region113: #{tpu_custom_call.1} parent=55 // pred_check
          %p1501 = pneg %p334
        $region114: #{tpu_custom_call.1} parent=55 // pred_check_branch
          %1503 = sbr.rel (%p1501) target = $region116
        $region115: #{tpu_custom_call.1} parent=55 // pred_region
          %1505 = dma.done [#allocation21], 32
        $region116: #{tpu_custom_call.1} parent=55 // pred_fallthru
          _
      $region56: #{tpu_custom_call.1} parent=5 // pred_fallthru
        _
      %p1506 = scmp.le.s32.totalorder 2, %s29
      // Predicated region
      $region117: #{tpu_custom_call.1} parent=5 // pred_check
        %p1507 = pneg %p1506
      $region118: #{tpu_custom_call.1} parent=5 // pred_check_branch
        %1509 = sbr.rel (%p1507) target = $region120
      $region119: #{tpu_custom_call.1} parent=5 // pred_region
        %s1510 = ssub.s32 %s29, 2
        // Predicated region
        $region121: #{tpu_custom_call.1} parent=119 // pred_check
          %p1511 = pneg %p288
        $region122: #{tpu_custom_call.1} parent=119 // pred_check_branch
          %1513 = sbr.rel (%p1511) target = $region124
        $region123: #{tpu_custom_call.1} parent=119 // pred_region
          %s1514 = sand.u32 %s273, 1
          %s1515 = scalar_lea.sflag [#allocation7], %s1514
          %s1516 = sand.u32 %s273, 1
          %s1517 = smul.addr %s1516, 16
          %s1518 = scalar_lea.vmem [#allocation19], %s1517
          %1520 = dma.done %s1515, 256
        $region124: #{tpu_custom_call.1} parent=119 // pred_fallthru
          _
      $region120: #{tpu_custom_call.1} parent=5 // pred_fallthru
        _
    $region6: #{tpu_custom_call.1} parent=1 // loop_footer
      %s33 = sadd.s32 1, %s29
    $region7: #{tpu_custom_call.1} parent=1 // loop_footer_branch
      %28 = sbr.rel target = $region3
    $region8: #{tpu_custom_call.1} parent=1 // loop_exit
      _
    %1521 = vsyncpa [#allocation6], 1
    %s1522 = scalar_lea.sflag [#allocation6], 1
    %1523 = vsyncpa %s1522, 1
    %1524 = vsyncpa [#allocation9], 1
    %1525 = vsyncpa [#allocation12], 1
    %1526 = vsyncpa [#allocation15], 1
    %1527 = vsyncpa [#allocation18], 1
    %1528 = vsyncpa [#allocation7], 1
    %s1529 = scalar_lea.sflag [#allocation7], 1
    %1530 = vsyncpa %s1529, 1
    %1531 = vsyncpa [#allocation21], 1

</llo_original>
